<compile_context>
chip_gen: v6e
topology: v6e:2x2x1
jax: 0.10.0
libtpu: 0.0.40
codegen_flags: <defaults>
</compile_context>

<pallas_src>
import jax
import jax.numpy as jnp
from jax import lax
from jax.experimental import pallas as pl
from jax.experimental.pallas import tpu as pltpu

INPUT_SIZE = 1
HIDDEN = 16
GATES = 4 * HIDDEN          # 64
OUT_FEATS = 3
RHS_WIDTH = 128             # fused RHS width: cols 0:64 gates, 64:67 output head
SLAB_ROWS = 24              # 16 weight rows + w_ih row + bias row + pad to 8-mult


def _lstm_kernel(x_ref, h0_ref, c0_ref, slab_ref, y_ref, hn_ref, cn_ref, gx_ref):
    """x_ref: (B, T, 1); slab_ref: (24, 128); y_ref: (B, T, 3); gx_ref scratch."""
    T = x_ref.shape[1]

    # Hoisted parameter loads.
    w_mat = slab_ref[0:HIDDEN, :]                  # (16, 128)  [W_hh*s | W_out | 0]
    w_row = slab_ref[HIDDEN:HIDDEN + 1, :]         # (1, 128)   scaled w_ih row | 0
    b_row = slab_ref[HIDDEN + 1:HIDDEN + 2, :]     # (1, 128)   scaled bias | b_out | 0

    # ---- Phase 1: input-to-gate contribution for ALL steps (VPU broadcast,
    #      off the serial path).  gx[b, t, :] = x[b, t] * w_row + b_row.
    #      Columns 64:67 of every gx row are exactly b_out (w_row is 0 there).
    gx_ref[...] = x_ref[...] * w_row[None] + b_row[None]      # (B, T, 128)

    h = h0_ref[...]                                            # (B, 16)
    c = c0_ref[...]                                            # (B, 16)

    # ---- Phase 2: serial recurrence.  One (B,16)@(16,128) MXU matmul and one
    #      whole-gate tanh + one tanh(c) per step.  Fully unrolled (T static).
    # TODO(synk): for T >> 100 switch to lax.fori_loop / a T-chunked grid.
    for t in range(T):
        full = jnp.dot(h, w_mat, preferred_element_type=jnp.float32) \
            + gx_ref[:, t, :]                                  # (B, 128)
        if t > 0:
            # cols 64:67 = h_{t-1} @ W_out + b_out  ->  output for step t-1
            y_ref[:, t - 1, :] = full[:, GATES:GATES + OUT_FEATS].astype(y_ref.dtype)

        # i/f/o columns were pre-scaled by 0.5: sigmoid(z) = 0.5*(1+tanh(z/2)).
        tg = jnp.tanh(full[:, :GATES])                         # one EUP pass, (B, 64)
        i_g = 0.5 + 0.5 * tg[:, 0 * HIDDEN:1 * HIDDEN]
        f_g = 0.5 + 0.5 * tg[:, 1 * HIDDEN:2 * HIDDEN]
        g_g = tg[:, 2 * HIDDEN:3 * HIDDEN]
        o_g = 0.5 + 0.5 * tg[:, 3 * HIDDEN:4 * HIDDEN]
        c = f_g * c + i_g * g_g
        h = o_g * jnp.tanh(c)

    # ---- Tail: output for the last timestep (off the critical chain).
    tail = jnp.dot(h, w_mat, preferred_element_type=jnp.float32)
    y_ref[:, T - 1, :] = (tail[:, GATES:GATES + OUT_FEATS]
                          + b_row[:, GATES:GATES + OUT_FEATS]).astype(y_ref.dtype)

    hn_ref[0] = h.astype(hn_ref.dtype)
    cn_ref[0] = c.astype(cn_ref.dtype)


def skewed_gaussian_rnn_forward(x, packed_slab, hidden=None):
    """x: (B, T, 1).  Returns (mu, logvar1, logvar2, (h_n, c_n)) like the module."""
    B, T, _ = x.shape

    if hidden is None:
        h0 = jnp.zeros((B, HIDDEN), jnp.float32)
        c0 = jnp.zeros((B, HIDDEN), jnp.float32)
    else:
        h0 = jnp.reshape(hidden[0], (B, HIDDEN)).astype(jnp.float32)
        c0 = jnp.reshape(hidden[1], (B, HIDDEN)).astype(jnp.float32)

    vmem = pl.BlockSpec(memory_space=pltpu.MemorySpace.VMEM)

    y, h_n, c_n = pl.pallas_call(
        _lstm_kernel,
        out_shape=(
            jax.ShapeDtypeStruct((B, T, OUT_FEATS), jnp.float32),
            jax.ShapeDtypeStruct((1, B, HIDDEN), jnp.float32),
            jax.ShapeDtypeStruct((1, B, HIDDEN), jnp.float32),
        ),
        in_specs=[vmem] * 4,
        out_specs=(vmem, vmem, vmem),
        scratch_shapes=[
            pltpu.VMEM((B, T, RHS_WIDTH), jnp.float32),   # precomputed x-gate rows
        ],
    )(x.astype(jnp.float32), h0, c0, packed_slab)

    mu = y[..., 0:1]
    logvar1 = y[..., 1:2]
    logvar2 = y[..., 2:3]
    return mu, logvar1, logvar2, (h_n, c_n)


def init_params(key):
    """PyTorch-style LSTM/Linear params (uniform +-1/sqrt(H)), natural layout."""
    ks = jax.random.split(key, 6)
    bound = 1.0 / jnp.sqrt(jnp.float32(HIDDEN))
    w_ih = jax.random.uniform(ks[0], (GATES, INPUT_SIZE), jnp.float32, -bound, bound)
    w_hh = jax.random.uniform(ks[1], (GATES, HIDDEN), jnp.float32, -bound, bound)
    b_ih = jax.random.uniform(ks[2], (GATES,), jnp.float32, -bound, bound)
    b_hh = jax.random.uniform(ks[3], (GATES,), jnp.float32, -bound, bound)
    w_out = jax.random.uniform(ks[4], (OUT_FEATS, HIDDEN), jnp.float32, -bound, bound)
    b_out = jax.random.uniform(ks[5], (OUT_FEATS,), jnp.float32, -bound, bound)
    return (w_ih, w_hh, b_ih, b_hh, w_out, b_out)


def pack_params(params):
    """Pack all parameters into one (24, 128) f32 slab for the kernel.

    Rows 0:16  = [ W_hh^T * s | W_out^T | 0 ]   (s = 0.5 on i/f/o cols, 1 on g)
    Row  16    = [ w_ih row  * s | 0 ]
    Row  17    = [ (b_ih+b_hh)*s | b_out | 0 ]
    Rows 18:24 = zero padding (8-row alignment).
    """
    w_ih, w_hh, b_ih, b_hh, w_out, b_out = params
    scale = jnp.concatenate([
        jnp.full((2 * HIDDEN,), 0.5, jnp.float32),   # i, f  (sigmoid-via-tanh)
        jnp.ones((HIDDEN,), jnp.float32),            # g     (plain tanh)
        jnp.full((HIDDEN,), 0.5, jnp.float32),       # o     (sigmoid-via-tanh)
    ])
    slab = jnp.zeros((SLAB_ROWS, RHS_WIDTH), jnp.float32)
    slab = slab.at[0:HIDDEN, 0:GATES].set(w_hh.T * scale[None, :])
    slab = slab.at[0:HIDDEN, GATES:GATES + OUT_FEATS].set(w_out.T)
    slab = slab.at[HIDDEN, 0:GATES].set(w_ih[:, 0] * scale)
    slab = slab.at[HIDDEN + 1, 0:GATES].set((b_ih + b_hh) * scale)
    slab = slab.at[HIDDEN + 1, GATES:GATES + OUT_FEATS].set(b_out)
    return slab


def _reference_forward(x, params, h0=None, c0=None):
    """Pure-JAX reference (lax.scan), exact PyTorch LSTM/Linear math."""
    w_ih, w_hh, b_ih, b_hh, w_out, b_out = params
    B = x.shape[0]
    if h0 is None:
        h0 = jnp.zeros((B, HIDDEN), jnp.float32)
    if c0 is None:
        c0 = jnp.zeros((B, HIDDEN), jnp.float32)
    w_ih_t, w_hh_t = w_ih.T, w_hh.T
    b = (b_ih + b_hh)[None, :]
    w_out_t, b_out_r = w_out.T, b_out[None, :]

    def step(carry, x_t):
        h, c = carry
        gates = x_t @ w_ih_t + h @ w_hh_t + b
        i_g = jax.nn.sigmoid(gates[:, 0 * HIDDEN:1 * HIDDEN])
        f_g = jax.nn.sigmoid(gates[:, 1 * HIDDEN:2 * HIDDEN])
        g_g = jnp.tanh(gates[:, 2 * HIDDEN:3 * HIDDEN])
        o_g = jax.nn.sigmoid(gates[:, 3 * HIDDEN:4 * HIDDEN])
        c_new = f_g * c + i_g * g_g
        h_new = o_g * jnp.tanh(c_new)
        y = h_new @ w_out_t + b_out_r
        return (h_new, c_new), y

    (h_n, c_n), ys = lax.scan(step, (h0, c0), jnp.transpose(x, (1, 0, 2)))
    return jnp.transpose(ys, (1, 0, 2)), h_n, c_n


if __name__ == "__main__":
    key = jax.random.PRNGKey(0)
    k_param, k_x1, k_x2 = jax.random.split(key, 3)

    B, T = 2, 8
    params = init_params(k_param)
    slab = pack_params(params)
    x1 = jax.random.normal(k_x1, (B, T, INPUT_SIZE), jnp.float32)
    x2 = jax.random.normal(k_x2, (B, T, INPUT_SIZE), jnp.float32)

    fwd = jax.jit(skewed_gaussian_rnn_forward)

    # --- call 1: hidden=None
    mu, lv1, lv2, (h_n, c_n) = fwd(x1, slab)
    jax.block_until_ready((mu, lv1, lv2, h_n, c_n))

    y_ref, h_ref, c_ref = _reference_forward(x1, params)
    y_ker = jnp.concatenate([mu, lv1, lv2], axis=-1)
    assert jnp.allclose(y_ker, y_ref, atol=2e-5, rtol=2e-5)
    assert jnp.allclose(h_n[0], h_ref, atol=2e-5, rtol=2e-5)
    assert jnp.allclose(c_n[0], c_ref, atol=2e-5, rtol=2e-5)
    assert mu.shape == (B, T, 1) and lv1.shape == (B, T, 1) and lv2.shape == (B, T, 1)
    assert h_n.shape == (1, B, HIDDEN) and c_n.shape == (1, B, HIDDEN)

    # --- call 2: chained hidden state (forward(x, hidden))
    mu2, lv12, lv22, (h_n2, c_n2) = fwd(x2, slab, (h_n, c_n))
    jax.block_until_ready((mu2, lv12, lv22, h_n2, c_n2))

    y_ref2, h_ref2, c_ref2 = _reference_forward(x2, params, h0=h_ref, c0=c_ref)
    y_ker2 = jnp.concatenate([mu2, lv12, lv22], axis=-1)
    assert jnp.allclose(y_ker2, y_ref2, atol=2e-5, rtol=2e-5)
    assert jnp.allclose(h_n2[0], h_ref2, atol=2e-5, rtol=2e-5)
    assert jnp.allclose(c_n2[0], c_ref2, atol=2e-5, rtol=2e-5)

    print("KERNEL_OK")
</pallas_src>

<mosaic_0001>
module attributes {stable_mosaic.version = 11 : i64} {
  func.func @_lstm_kernel(%arg0: memref<2x8x1xf32, #tpu.memory_space<vmem>>, %arg1: memref<2x16xf32, #tpu.memory_space<vmem>>, %arg2: memref<2x16xf32, #tpu.memory_space<vmem>>, %arg3: memref<24x128xf32, #tpu.memory_space<vmem>>, %arg4: memref<2x8x3xf32, #tpu.memory_space<vmem>>, %arg5: memref<1x2x16xf32, #tpu.memory_space<vmem>>, %arg6: memref<1x2x16xf32, #tpu.memory_space<vmem>>, %arg7: memref<2x8x128xf32, #tpu.memory_space<vmem>>) attributes {dimension_semantics = [], scalar_prefetch = 0 : i64, scratch_operands = 1 : i64, tpu.core_type = #tpu.core_type<tc>} {
    %c0 = arith.constant 0 : index
    %c0_0 = arith.constant 0 : index
    %0 = vector.load %arg3[%c0, %c0_0] : memref<24x128xf32, #tpu.memory_space<vmem>>, vector<16x128xf32>
    %c16 = arith.constant 16 : index
    %c0_1 = arith.constant 0 : index
    %1 = vector.load %arg3[%c16, %c0_1] : memref<24x128xf32, #tpu.memory_space<vmem>>, vector<1x128xf32>
    %c17 = arith.constant 17 : index
    %c0_2 = arith.constant 0 : index
    %2 = vector.load %arg3[%c17, %c0_2] : memref<24x128xf32, #tpu.memory_space<vmem>>, vector<1x128xf32>
    %c0_3 = arith.constant 0 : index
    %c0_4 = arith.constant 0 : index
    %c0_5 = arith.constant 0 : index
    %3 = vector.load %arg0[%c0_3, %c0_4, %c0_5] : memref<2x8x1xf32, #tpu.memory_space<vmem>>, vector<2x8x1xf32>
    %4 = vector.shape_cast %1 : vector<1x128xf32> to vector<1x1x128xf32>
    %5 = vector.broadcast %3 : vector<2x8x1xf32> to vector<2x8x128xf32>
    %6 = vector.broadcast %4 : vector<1x1x128xf32> to vector<2x8x128xf32>
    %7 = arith.mulf %5, %6 : vector<2x8x128xf32>
    %8 = vector.shape_cast %2 : vector<1x128xf32> to vector<1x1x128xf32>
    %9 = vector.broadcast %8 : vector<1x1x128xf32> to vector<2x8x128xf32>
    %10 = arith.addf %7, %9 : vector<2x8x128xf32>
    %c0_6 = arith.constant 0 : index
    %c0_7 = arith.constant 0 : index
    %c0_8 = arith.constant 0 : index
    %11 = vector.load %arg7[%c0_6, %c0_7, %c0_8] : memref<2x8x128xf32, #tpu.memory_space<vmem>>, vector<2x8x128xf32>
    tpu.vector_store %arg7[%c0_6, %c0_7, %c0_8], %10 {strides = array<i32>} : memref<2x8x128xf32, #tpu.memory_space<vmem>>, vector<2x8x128xf32>,
    %c0_9 = arith.constant 0 : index
    %c0_10 = arith.constant 0 : index
    %12 = vector.load %arg1[%c0_9, %c0_10] : memref<2x16xf32, #tpu.memory_space<vmem>>, vector<2x16xf32>
    %c0_11 = arith.constant 0 : index
    %c0_12 = arith.constant 0 : index
    %13 = vector.load %arg2[%c0_11, %c0_12] : memref<2x16xf32, #tpu.memory_space<vmem>>, vector<2x16xf32>
    %cst = arith.constant dense<0.000000e+00> : vector<2x128xf32>
    %14 = tpu.matmul %12, %0, %cst {dimension_numbers = #tpu.dot_dimension_numbers<[1], [0], [0], [1], [0, 0, 1, 1], [], []>} : vector<2x16xf32>, vector<16x128xf32>, vector<2x128xf32> -> vector<2x128xf32>
    %c0_13 = arith.constant 0 : index
    %c0_14 = arith.constant 0 : index
    %c0_15 = arith.constant 0 : index
    %15 = vector.load %arg7[%c0_13, %c0_14, %c0_15] : memref<2x8x128xf32, #tpu.memory_space<vmem>>, vector<2x1x128xf32>
    %16 = vector.shape_cast %15 : vector<2x1x128xf32> to vector<2x128xf32>
    %17 = arith.addf %14, %16 : vector<2x128xf32>
    %18 = vector.extract_strided_slice %17 {offsets = [0, 0], sizes = [2, 64], strides = [1, 1]} : vector<2x128xf32> to vector<2x64xf32>
    %19 = math.tanh %18 : vector<2x64xf32>
    %20 = vector.extract_strided_slice %19 {offsets = [0, 0], sizes = [2, 16], strides = [1, 1]} : vector<2x64xf32> to vector<2x16xf32>
    %cst_16 = arith.constant 5.000000e-01 : f32
    %21 = vector.broadcast %cst_16 : f32 to vector<2x16xf32>
    %22 = arith.mulf %21, %20 : vector<2x16xf32>
    %cst_17 = arith.constant 5.000000e-01 : f32
    %23 = vector.broadcast %cst_17 : f32 to vector<2x16xf32>
    %24 = arith.addf %23, %22 : vector<2x16xf32>
    %25 = vector.extract_strided_slice %19 {offsets = [0, 16], sizes = [2, 16], strides = [1, 1]} : vector<2x64xf32> to vector<2x16xf32>
    %cst_18 = arith.constant 5.000000e-01 : f32
    %26 = vector.broadcast %cst_18 : f32 to vector<2x16xf32>
    %27 = arith.mulf %26, %25 : vector<2x16xf32>
    %cst_19 = arith.constant 5.000000e-01 : f32
    %28 = vector.broadcast %cst_19 : f32 to vector<2x16xf32>
    %29 = arith.addf %28, %27 : vector<2x16xf32>
    %30 = vector.extract_strided_slice %19 {offsets = [0, 32], sizes = [2, 16], strides = [1, 1]} : vector<2x64xf32> to vector<2x16xf32>
    %31 = vector.extract_strided_slice %19 {offsets = [0, 48], sizes = [2, 16], strides = [1, 1]} : vector<2x64xf32> to vector<2x16xf32>
    %cst_20 = arith.constant 5.000000e-01 : f32
    %32 = vector.broadcast %cst_20 : f32 to vector<2x16xf32>
    %33 = arith.mulf %32, %31 : vector<2x16xf32>
    %cst_21 = arith.constant 5.000000e-01 : f32
    %34 = vector.broadcast %cst_21 : f32 to vector<2x16xf32>
    %35 = arith.addf %34, %33 : vector<2x16xf32>
    %36 = arith.mulf %29, %13 : vector<2x16xf32>
    %37 = arith.mulf %24, %30 : vector<2x16xf32>
    %38 = arith.addf %36, %37 : vector<2x16xf32>
    %39 = math.tanh %38 : vector<2x16xf32>
    %40 = arith.mulf %35, %39 : vector<2x16xf32>
    %cst_22 = arith.constant dense<0.000000e+00> : vector<2x128xf32>
    %41 = tpu.matmul %40, %0, %cst_22 {dimension_numbers = #tpu.dot_dimension_numbers<[1], [0], [0], [1], [0, 0, 1, 1], [], []>} : vector<2x16xf32>, vector<16x128xf32>, vector<2x128xf32> -> vector<2x128xf32>
    %c0_23 = arith.constant 0 : index
    %c1 = arith.constant 1 : index
    %c0_24 = arith.constant 0 : index
    %42 = vector.load %arg7[%c0_23, %c1, %c0_24] : memref<2x8x128xf32, #tpu.memory_space<vmem>>, vector<2x1x128xf32>
    %43 = vector.shape_cast %42 : vector<2x1x128xf32> to vector<2x128xf32>
    %44 = arith.addf %41, %43 : vector<2x128xf32>
    %45 = vector.extract_strided_slice %44 {offsets = [0, 64], sizes = [2, 3], strides = [1, 1]} : vector<2x128xf32> to vector<2x3xf32>
    %c0_25 = arith.constant 0 : index
    %c0_26 = arith.constant 0 : index
    %c0_27 = arith.constant 0 : index
    %46 = vector.load %arg4[%c0_25, %c0_26, %c0_27] : memref<2x8x3xf32, #tpu.memory_space<vmem>>, vector<2x1x3xf32>
    %47 = vector.shape_cast %46 : vector<2x1x3xf32> to vector<2x3xf32>
    %48 = vector.shape_cast %45 : vector<2x3xf32> to vector<2x1x3xf32>
    tpu.vector_store %arg4[%c0_25, %c0_26, %c0_27], %48 {strides = array<i32>} : memref<2x8x3xf32, #tpu.memory_space<vmem>>, vector<2x1x3xf32>,
    %49 = vector.extract_strided_slice %44 {offsets = [0, 0], sizes = [2, 64], strides = [1, 1]} : vector<2x128xf32> to vector<2x64xf32>
    %50 = math.tanh %49 : vector<2x64xf32>
    %51 = vector.extract_strided_slice %50 {offsets = [0, 0], sizes = [2, 16], strides = [1, 1]} : vector<2x64xf32> to vector<2x16xf32>
    %cst_28 = arith.constant 5.000000e-01 : f32
    %52 = vector.broadcast %cst_28 : f32 to vector<2x16xf32>
    %53 = arith.mulf %52, %51 : vector<2x16xf32>
    %cst_29 = arith.constant 5.000000e-01 : f32
    %54 = vector.broadcast %cst_29 : f32 to vector<2x16xf32>
    %55 = arith.addf %54, %53 : vector<2x16xf32>
    %56 = vector.extract_strided_slice %50 {offsets = [0, 16], sizes = [2, 16], strides = [1, 1]} : vector<2x64xf32> to vector<2x16xf32>
    %cst_30 = arith.constant 5.000000e-01 : f32
    %57 = vector.broadcast %cst_30 : f32 to vector<2x16xf32>
    %58 = arith.mulf %57, %56 : vector<2x16xf32>
    %cst_31 = arith.constant 5.000000e-01 : f32
    %59 = vector.broadcast %cst_31 : f32 to vector<2x16xf32>
    %60 = arith.addf %59, %58 : vector<2x16xf32>
    %61 = vector.extract_strided_slice %50 {offsets = [0, 32], sizes = [2, 16], strides = [1, 1]} : vector<2x64xf32> to vector<2x16xf32>
    %62 = vector.extract_strided_slice %50 {offsets = [0, 48], sizes = [2, 16], strides = [1, 1]} : vector<2x64xf32> to vector<2x16xf32>
    %cst_32 = arith.constant 5.000000e-01 : f32
    %63 = vector.broadcast %cst_32 : f32 to vector<2x16xf32>
    %64 = arith.mulf %63, %62 : vector<2x16xf32>
    %cst_33 = arith.constant 5.000000e-01 : f32
    %65 = vector.broadcast %cst_33 : f32 to vector<2x16xf32>
    %66 = arith.addf %65, %64 : vector<2x16xf32>
    %67 = arith.mulf %60, %38 : vector<2x16xf32>
    %68 = arith.mulf %55, %61 : vector<2x16xf32>
    %69 = arith.addf %67, %68 : vector<2x16xf32>
    %70 = math.tanh %69 : vector<2x16xf32>
    %71 = arith.mulf %66, %70 : vector<2x16xf32>
    %cst_34 = arith.constant dense<0.000000e+00> : vector<2x128xf32>
    %72 = tpu.matmul %71, %0, %cst_34 {dimension_numbers = #tpu.dot_dimension_numbers<[1], [0], [0], [1], [0, 0, 1, 1], [], []>} : vector<2x16xf32>, vector<16x128xf32>, vector<2x128xf32> -> vector<2x128xf32>
    %c0_35 = arith.constant 0 : index
    %c2 = arith.constant 2 : index
    %c0_36 = arith.constant 0 : index
    %73 = vector.load %arg7[%c0_35, %c2, %c0_36] : memref<2x8x128xf32, #tpu.memory_space<vmem>>, vector<2x1x128xf32>
    %74 = vector.shape_cast %73 : vector<2x1x128xf32> to vector<2x128xf32>
    %75 = arith.addf %72, %74 : vector<2x128xf32>
    %76 = vector.extract_strided_slice %75 {offsets = [0, 64], sizes = [2, 3], strides = [1, 1]} : vector<2x128xf32> to vector<2x3xf32>
    %c0_37 = arith.constant 0 : index
    %c1_38 = arith.constant 1 : index
    %c0_39 = arith.constant 0 : index
    %77 = vector.load %arg4[%c0_37, %c1_38, %c0_39] : memref<2x8x3xf32, #tpu.memory_space<vmem>>, vector<2x1x3xf32>
    %78 = vector.shape_cast %77 : vector<2x1x3xf32> to vector<2x3xf32>
    %79 = vector.shape_cast %76 : vector<2x3xf32> to vector<2x1x3xf32>
    tpu.vector_store %arg4[%c0_37, %c1_38, %c0_39], %79 {strides = array<i32>} : memref<2x8x3xf32, #tpu.memory_space<vmem>>, vector<2x1x3xf32>,
    %80 = vector.extract_strided_slice %75 {offsets = [0, 0], sizes = [2, 64], strides = [1, 1]} : vector<2x128xf32> to vector<2x64xf32>
    %81 = math.tanh %80 : vector<2x64xf32>
    %82 = vector.extract_strided_slice %81 {offsets = [0, 0], sizes = [2, 16], strides = [1, 1]} : vector<2x64xf32> to vector<2x16xf32>
    %cst_40 = arith.constant 5.000000e-01 : f32
    %83 = vector.broadcast %cst_40 : f32 to vector<2x16xf32>
    %84 = arith.mulf %83, %82 : vector<2x16xf32>
    %cst_41 = arith.constant 5.000000e-01 : f32
    %85 = vector.broadcast %cst_41 : f32 to vector<2x16xf32>
    %86 = arith.addf %85, %84 : vector<2x16xf32>
    %87 = vector.extract_strided_slice %81 {offsets = [0, 16], sizes = [2, 16], strides = [1, 1]} : vector<2x64xf32> to vector<2x16xf32>
    %cst_42 = arith.constant 5.000000e-01 : f32
    %88 = vector.broadcast %cst_42 : f32 to vector<2x16xf32>
    %89 = arith.mulf %88, %87 : vector<2x16xf32>
    %cst_43 = arith.constant 5.000000e-01 : f32
    %90 = vector.broadcast %cst_43 : f32 to vector<2x16xf32>
    %91 = arith.addf %90, %89 : vector<2x16xf32>
    %92 = vector.extract_strided_slice %81 {offsets = [0, 32], sizes = [2, 16], strides = [1, 1]} : vector<2x64xf32> to vector<2x16xf32>
    %93 = vector.extract_strided_slice %81 {offsets = [0, 48], sizes = [2, 16], strides = [1, 1]} : vector<2x64xf32> to vector<2x16xf32>
    %cst_44 = arith.constant 5.000000e-01 : f32
    %94 = vector.broadcast %cst_44 : f32 to vector<2x16xf32>
    %95 = arith.mulf %94, %93 : vector<2x16xf32>
    %cst_45 = arith.constant 5.000000e-01 : f32
    %96 = vector.broadcast %cst_45 : f32 to vector<2x16xf32>
    %97 = arith.addf %96, %95 : vector<2x16xf32>
    %98 = arith.mulf %91, %69 : vector<2x16xf32>
    %99 = arith.mulf %86, %92 : vector<2x16xf32>
    %100 = arith.addf %98, %99 : vector<2x16xf32>
    %101 = math.tanh %100 : vector<2x16xf32>
    %102 = arith.mulf %97, %101 : vector<2x16xf32>
    %cst_46 = arith.constant dense<0.000000e+00> : vector<2x128xf32>
    %103 = tpu.matmul %102, %0, %cst_46 {dimension_numbers = #tpu.dot_dimension_numbers<[1], [0], [0], [1], [0, 0, 1, 1], [], []>} : vector<2x16xf32>, vector<16x128xf32>, vector<2x128xf32> -> vector<2x128xf32>
    %c0_47 = arith.constant 0 : index
    %c3 = arith.constant 3 : index
    %c0_48 = arith.constant 0 : index
    %104 = vector.load %arg7[%c0_47, %c3, %c0_48] : memref<2x8x128xf32, #tpu.memory_space<vmem>>, vector<2x1x128xf32>
    %105 = vector.shape_cast %104 : vector<2x1x128xf32> to vector<2x128xf32>
    %106 = arith.addf %103, %105 : vector<2x128xf32>
    %107 = vector.extract_strided_slice %106 {offsets = [0, 64], sizes = [2, 3], strides = [1, 1]} : vector<2x128xf32> to vector<2x3xf32>
    %c0_49 = arith.constant 0 : index
    %c2_50 = arith.constant 2 : index
    %c0_51 = arith.constant 0 : index
    %108 = vector.load %arg4[%c0_49, %c2_50, %c0_51] : memref<2x8x3xf32, #tpu.memory_space<vmem>>, vector<2x1x3xf32>
    %109 = vector.shape_cast %108 : vector<2x1x3xf32> to vector<2x3xf32>
    %110 = vector.shape_cast %107 : vector<2x3xf32> to vector<2x1x3xf32>
    tpu.vector_store %arg4[%c0_49, %c2_50, %c0_51], %110 {strides = array<i32>} : memref<2x8x3xf32, #tpu.memory_space<vmem>>, vector<2x1x3xf32>,
    %111 = vector.extract_strided_slice %106 {offsets = [0, 0], sizes = [2, 64], strides = [1, 1]} : vector<2x128xf32> to vector<2x64xf32>
    %112 = math.tanh %111 : vector<2x64xf32>
    %113 = vector.extract_strided_slice %112 {offsets = [0, 0], sizes = [2, 16], strides = [1, 1]} : vector<2x64xf32> to vector<2x16xf32>
    %cst_52 = arith.constant 5.000000e-01 : f32
    %114 = vector.broadcast %cst_52 : f32 to vector<2x16xf32>
    %115 = arith.mulf %114, %113 : vector<2x16xf32>
    %cst_53 = arith.constant 5.000000e-01 : f32
    %116 = vector.broadcast %cst_53 : f32 to vector<2x16xf32>
    %117 = arith.addf %116, %115 : vector<2x16xf32>
    %118 = vector.extract_strided_slice %112 {offsets = [0, 16], sizes = [2, 16], strides = [1, 1]} : vector<2x64xf32> to vector<2x16xf32>
    %cst_54 = arith.constant 5.000000e-01 : f32
    %119 = vector.broadcast %cst_54 : f32 to vector<2x16xf32>
    %120 = arith.mulf %119, %118 : vector<2x16xf32>
    %cst_55 = arith.constant 5.000000e-01 : f32
    %121 = vector.broadcast %cst_55 : f32 to vector<2x16xf32>
    %122 = arith.addf %121, %120 : vector<2x16xf32>
    %123 = vector.extract_strided_slice %112 {offsets = [0, 32], sizes = [2, 16], strides = [1, 1]} : vector<2x64xf32> to vector<2x16xf32>
    %124 = vector.extract_strided_slice %112 {offsets = [0, 48], sizes = [2, 16], strides = [1, 1]} : vector<2x64xf32> to vector<2x16xf32>
    %cst_56 = arith.constant 5.000000e-01 : f32
    %125 = vector.broadcast %cst_56 : f32 to vector<2x16xf32>
    %126 = arith.mulf %125, %124 : vector<2x16xf32>
    %cst_57 = arith.constant 5.000000e-01 : f32
    %127 = vector.broadcast %cst_57 : f32 to vector<2x16xf32>
    %128 = arith.addf %127, %126 : vector<2x16xf32>
    %129 = arith.mulf %122, %100 : vector<2x16xf32>
    %130 = arith.mulf %117, %123 : vector<2x16xf32>
    %131 = arith.addf %129, %130 : vector<2x16xf32>
    %132 = math.tanh %131 : vector<2x16xf32>
    %133 = arith.mulf %128, %132 : vector<2x16xf32>
    %cst_58 = arith.constant dense<0.000000e+00> : vector<2x128xf32>
    %134 = tpu.matmul %133, %0, %cst_58 {dimension_numbers = #tpu.dot_dimension_numbers<[1], [0], [0], [1], [0, 0, 1, 1], [], []>} : vector<2x16xf32>, vector<16x128xf32>, vector<2x128xf32> -> vector<2x128xf32>
    %c0_59 = arith.constant 0 : index
    %c4 = arith.constant 4 : index
    %c0_60 = arith.constant 0 : index
    %135 = vector.load %arg7[%c0_59, %c4, %c0_60] : memref<2x8x128xf32, #tpu.memory_space<vmem>>, vector<2x1x128xf32>
    %136 = vector.shape_cast %135 : vector<2x1x128xf32> to vector<2x128xf32>
    %137 = arith.addf %134, %136 : vector<2x128xf32>
    %138 = vector.extract_strided_slice %137 {offsets = [0, 64], sizes = [2, 3], strides = [1, 1]} : vector<2x128xf32> to vector<2x3xf32>
    %c0_61 = arith.constant 0 : index
    %c3_62 = arith.constant 3 : index
    %c0_63 = arith.constant 0 : index
    %139 = vector.load %arg4[%c0_61, %c3_62, %c0_63] : memref<2x8x3xf32, #tpu.memory_space<vmem>>, vector<2x1x3xf32>
    %140 = vector.shape_cast %139 : vector<2x1x3xf32> to vector<2x3xf32>
    %141 = vector.shape_cast %138 : vector<2x3xf32> to vector<2x1x3xf32>
    tpu.vector_store %arg4[%c0_61, %c3_62, %c0_63], %141 {strides = array<i32>} : memref<2x8x3xf32, #tpu.memory_space<vmem>>, vector<2x1x3xf32>,
    %142 = vector.extract_strided_slice %137 {offsets = [0, 0], sizes = [2, 64], strides = [1, 1]} : vector<2x128xf32> to vector<2x64xf32>
    %143 = math.tanh %142 : vector<2x64xf32>
    %144 = vector.extract_strided_slice %143 {offsets = [0, 0], sizes = [2, 16], strides = [1, 1]} : vector<2x64xf32> to vector<2x16xf32>
    %cst_64 = arith.constant 5.000000e-01 : f32
    %145 = vector.broadcast %cst_64 : f32 to vector<2x16xf32>
    %146 = arith.mulf %145, %144 : vector<2x16xf32>
    %cst_65 = arith.constant 5.000000e-01 : f32
    %147 = vector.broadcast %cst_65 : f32 to vector<2x16xf32>
    %148 = arith.addf %147, %146 : vector<2x16xf32>
    %149 = vector.extract_strided_slice %143 {offsets = [0, 16], sizes = [2, 16], strides = [1, 1]} : vector<2x64xf32> to vector<2x16xf32>
    %cst_66 = arith.constant 5.000000e-01 : f32
    %150 = vector.broadcast %cst_66 : f32 to vector<2x16xf32>
    %151 = arith.mulf %150, %149 : vector<2x16xf32>
    %cst_67 = arith.constant 5.000000e-01 : f32
    %152 = vector.broadcast %cst_67 : f32 to vector<2x16xf32>
    %153 = arith.addf %152, %151 : vector<2x16xf32>
    %154 = vector.extract_strided_slice %143 {offsets = [0, 32], sizes = [2, 16], strides = [1, 1]} : vector<2x64xf32> to vector<2x16xf32>
    %155 = vector.extract_strided_slice %143 {offsets = [0, 48], sizes = [2, 16], strides = [1, 1]} : vector<2x64xf32> to vector<2x16xf32>
    %cst_68 = arith.constant 5.000000e-01 : f32
    %156 = vector.broadcast %cst_68 : f32 to vector<2x16xf32>
    %157 = arith.mulf %156, %155 : vector<2x16xf32>
    %cst_69 = arith.constant 5.000000e-01 : f32
    %158 = vector.broadcast %cst_69 : f32 to vector<2x16xf32>
    %159 = arith.addf %158, %157 : vector<2x16xf32>
    %160 = arith.mulf %153, %131 : vector<2x16xf32>
    %161 = arith.mulf %148, %154 : vector<2x16xf32>
    %162 = arith.addf %160, %161 : vector<2x16xf32>
    %163 = math.tanh %162 : vector<2x16xf32>
    %164 = arith.mulf %159, %163 : vector<2x16xf32>
    %cst_70 = arith.constant dense<0.000000e+00> : vector<2x128xf32>
    %165 = tpu.matmul %164, %0, %cst_70 {dimension_numbers = #tpu.dot_dimension_numbers<[1], [0], [0], [1], [0, 0, 1, 1], [], []>} : vector<2x16xf32>, vector<16x128xf32>, vector<2x128xf32> -> vector<2x128xf32>
    %c0_71 = arith.constant 0 : index
    %c5 = arith.constant 5 : index
    %c0_72 = arith.constant 0 : index
    %166 = vector.load %arg7[%c0_71, %c5, %c0_72] : memref<2x8x128xf32, #tpu.memory_space<vmem>>, vector<2x1x128xf32>
    %167 = vector.shape_cast %166 : vector<2x1x128xf32> to vector<2x128xf32>
    %168 = arith.addf %165, %167 : vector<2x128xf32>
    %169 = vector.extract_strided_slice %168 {offsets = [0, 64], sizes = [2, 3], strides = [1, 1]} : vector<2x128xf32> to vector<2x3xf32>
    %c0_73 = arith.constant 0 : index
    %c4_74 = arith.constant 4 : index
    %c0_75 = arith.constant 0 : index
    %170 = vector.load %arg4[%c0_73, %c4_74, %c0_75] : memref<2x8x3xf32, #tpu.memory_space<vmem>>, vector<2x1x3xf32>
    %171 = vector.shape_cast %170 : vector<2x1x3xf32> to vector<2x3xf32>
    %172 = vector.shape_cast %169 : vector<2x3xf32> to vector<2x1x3xf32>
    tpu.vector_store %arg4[%c0_73, %c4_74, %c0_75], %172 {strides = array<i32>} : memref<2x8x3xf32, #tpu.memory_space<vmem>>, vector<2x1x3xf32>,
    %173 = vector.extract_strided_slice %168 {offsets = [0, 0], sizes = [2, 64], strides = [1, 1]} : vector<2x128xf32> to vector<2x64xf32>
    %174 = math.tanh %173 : vector<2x64xf32>
    %175 = vector.extract_strided_slice %174 {offsets = [0, 0], sizes = [2, 16], strides = [1, 1]} : vector<2x64xf32> to vector<2x16xf32>
    %cst_76 = arith.constant 5.000000e-01 : f32
    %176 = vector.broadcast %cst_76 : f32 to vector<2x16xf32>
    %177 = arith.mulf %176, %175 : vector<2x16xf32>
    %cst_77 = arith.constant 5.000000e-01 : f32
    %178 = vector.broadcast %cst_77 : f32 to vector<2x16xf32>
    %179 = arith.addf %178, %177 : vector<2x16xf32>
    %180 = vector.extract_strided_slice %174 {offsets = [0, 16], sizes = [2, 16], strides = [1, 1]} : vector<2x64xf32> to vector<2x16xf32>
    %cst_78 = arith.constant 5.000000e-01 : f32
    %181 = vector.broadcast %cst_78 : f32 to vector<2x16xf32>
    %182 = arith.mulf %181, %180 : vector<2x16xf32>
    %cst_79 = arith.constant 5.000000e-01 : f32
    %183 = vector.broadcast %cst_79 : f32 to vector<2x16xf32>
    %184 = arith.addf %183, %182 : vector<2x16xf32>
    %185 = vector.extract_strided_slice %174 {offsets = [0, 32], sizes = [2, 16], strides = [1, 1]} : vector<2x64xf32> to vector<2x16xf32>
    %186 = vector.extract_strided_slice %174 {offsets = [0, 48], sizes = [2, 16], strides = [1, 1]} : vector<2x64xf32> to vector<2x16xf32>
    %cst_80 = arith.constant 5.000000e-01 : f32
    %187 = vector.broadcast %cst_80 : f32 to vector<2x16xf32>
    %188 = arith.mulf %187, %186 : vector<2x16xf32>
    %cst_81 = arith.constant 5.000000e-01 : f32
    %189 = vector.broadcast %cst_81 : f32 to vector<2x16xf32>
    %190 = arith.addf %189, %188 : vector<2x16xf32>
    %191 = arith.mulf %184, %162 : vector<2x16xf32>
    %192 = arith.mulf %179, %185 : vector<2x16xf32>
    %193 = arith.addf %191, %192 : vector<2x16xf32>
    %194 = math.tanh %193 : vector<2x16xf32>
    %195 = arith.mulf %190, %194 : vector<2x16xf32>
    %cst_82 = arith.constant dense<0.000000e+00> : vector<2x128xf32>
    %196 = tpu.matmul %195, %0, %cst_82 {dimension_numbers = #tpu.dot_dimension_numbers<[1], [0], [0], [1], [0, 0, 1, 1], [], []>} : vector<2x16xf32>, vector<16x128xf32>, vector<2x128xf32> -> vector<2x128xf32>
    %c0_83 = arith.constant 0 : index
    %c6 = arith.constant 6 : index
    %c0_84 = arith.constant 0 : index
    %197 = vector.load %arg7[%c0_83, %c6, %c0_84] : memref<2x8x128xf32, #tpu.memory_space<vmem>>, vector<2x1x128xf32>
    %198 = vector.shape_cast %197 : vector<2x1x128xf32> to vector<2x128xf32>
    %199 = arith.addf %196, %198 : vector<2x128xf32>
    %200 = vector.extract_strided_slice %199 {offsets = [0, 64], sizes = [2, 3], strides = [1, 1]} : vector<2x128xf32> to vector<2x3xf32>
    %c0_85 = arith.constant 0 : index
    %c5_86 = arith.constant 5 : index
    %c0_87 = arith.constant 0 : index
    %201 = vector.load %arg4[%c0_85, %c5_86, %c0_87] : memref<2x8x3xf32, #tpu.memory_space<vmem>>, vector<2x1x3xf32>
    %202 = vector.shape_cast %201 : vector<2x1x3xf32> to vector<2x3xf32>
    %203 = vector.shape_cast %200 : vector<2x3xf32> to vector<2x1x3xf32>
    tpu.vector_store %arg4[%c0_85, %c5_86, %c0_87], %203 {strides = array<i32>} : memref<2x8x3xf32, #tpu.memory_space<vmem>>, vector<2x1x3xf32>,
    %204 = vector.extract_strided_slice %199 {offsets = [0, 0], sizes = [2, 64], strides = [1, 1]} : vector<2x128xf32> to vector<2x64xf32>
    %205 = math.tanh %204 : vector<2x64xf32>
    %206 = vector.extract_strided_slice %205 {offsets = [0, 0], sizes = [2, 16], strides = [1, 1]} : vector<2x64xf32> to vector<2x16xf32>
    %cst_88 = arith.constant 5.000000e-01 : f32
    %207 = vector.broadcast %cst_88 : f32 to vector<2x16xf32>
    %208 = arith.mulf %207, %206 : vector<2x16xf32>
    %cst_89 = arith.constant 5.000000e-01 : f32
    %209 = vector.broadcast %cst_89 : f32 to vector<2x16xf32>
    %210 = arith.addf %209, %208 : vector<2x16xf32>
    %211 = vector.extract_strided_slice %205 {offsets = [0, 16], sizes = [2, 16], strides = [1, 1]} : vector<2x64xf32> to vector<2x16xf32>
    %cst_90 = arith.constant 5.000000e-01 : f32
    %212 = vector.broadcast %cst_90 : f32 to vector<2x16xf32>
    %213 = arith.mulf %212, %211 : vector<2x16xf32>
    %cst_91 = arith.constant 5.000000e-01 : f32
    %214 = vector.broadcast %cst_91 : f32 to vector<2x16xf32>
    %215 = arith.addf %214, %213 : vector<2x16xf32>
    %216 = vector.extract_strided_slice %205 {offsets = [0, 32], sizes = [2, 16], strides = [1, 1]} : vector<2x64xf32> to vector<2x16xf32>
    %217 = vector.extract_strided_slice %205 {offsets = [0, 48], sizes = [2, 16], strides = [1, 1]} : vector<2x64xf32> to vector<2x16xf32>
    %cst_92 = arith.constant 5.000000e-01 : f32
    %218 = vector.broadcast %cst_92 : f32 to vector<2x16xf32>
    %219 = arith.mulf %218, %217 : vector<2x16xf32>
    %cst_93 = arith.constant 5.000000e-01 : f32
    %220 = vector.broadcast %cst_93 : f32 to vector<2x16xf32>
    %221 = arith.addf %220, %219 : vector<2x16xf32>
    %222 = arith.mulf %215, %193 : vector<2x16xf32>
    %223 = arith.mulf %210, %216 : vector<2x16xf32>
    %224 = arith.addf %222, %223 : vector<2x16xf32>
    %225 = math.tanh %224 : vector<2x16xf32>
    %226 = arith.mulf %221, %225 : vector<2x16xf32>
    %cst_94 = arith.constant dense<0.000000e+00> : vector<2x128xf32>
    %227 = tpu.matmul %226, %0, %cst_94 {dimension_numbers = #tpu.dot_dimension_numbers<[1], [0], [0], [1], [0, 0, 1, 1], [], []>} : vector<2x16xf32>, vector<16x128xf32>, vector<2x128xf32> -> vector<2x128xf32>
    %c0_95 = arith.constant 0 : index
    %c7 = arith.constant 7 : index
    %c0_96 = arith.constant 0 : index
    %228 = vector.load %arg7[%c0_95, %c7, %c0_96] : memref<2x8x128xf32, #tpu.memory_space<vmem>>, vector<2x1x128xf32>
    %229 = vector.shape_cast %228 : vector<2x1x128xf32> to vector<2x128xf32>
    %230 = arith.addf %227, %229 : vector<2x128xf32>
    %231 = vector.extract_strided_slice %230 {offsets = [0, 64], sizes = [2, 3], strides = [1, 1]} : vector<2x128xf32> to vector<2x3xf32>
    %c0_97 = arith.constant 0 : index
    %c6_98 = arith.constant 6 : index
    %c0_99 = arith.constant 0 : index
    %232 = vector.load %arg4[%c0_97, %c6_98, %c0_99] : memref<2x8x3xf32, #tpu.memory_space<vmem>>, vector<2x1x3xf32>
    %233 = vector.shape_cast %232 : vector<2x1x3xf32> to vector<2x3xf32>
    %234 = vector.shape_cast %231 : vector<2x3xf32> to vector<2x1x3xf32>
    tpu.vector_store %arg4[%c0_97, %c6_98, %c0_99], %234 {strides = array<i32>} : memref<2x8x3xf32, #tpu.memory_space<vmem>>, vector<2x1x3xf32>,
    %235 = vector.extract_strided_slice %230 {offsets = [0, 0], sizes = [2, 64], strides = [1, 1]} : vector<2x128xf32> to vector<2x64xf32>
    %236 = math.tanh %235 : vector<2x64xf32>
    %237 = vector.extract_strided_slice %236 {offsets = [0, 0], sizes = [2, 16], strides = [1, 1]} : vector<2x64xf32> to vector<2x16xf32>
    %cst_100 = arith.constant 5.000000e-01 : f32
    %238 = vector.broadcast %cst_100 : f32 to vector<2x16xf32>
    %239 = arith.mulf %238, %237 : vector<2x16xf32>
    %cst_101 = arith.constant 5.000000e-01 : f32
    %240 = vector.broadcast %cst_101 : f32 to vector<2x16xf32>
    %241 = arith.addf %240, %239 : vector<2x16xf32>
    %242 = vector.extract_strided_slice %236 {offsets = [0, 16], sizes = [2, 16], strides = [1, 1]} : vector<2x64xf32> to vector<2x16xf32>
    %cst_102 = arith.constant 5.000000e-01 : f32
    %243 = vector.broadcast %cst_102 : f32 to vector<2x16xf32>
    %244 = arith.mulf %243, %242 : vector<2x16xf32>
    %cst_103 = arith.constant 5.000000e-01 : f32
    %245 = vector.broadcast %cst_103 : f32 to vector<2x16xf32>
    %246 = arith.addf %245, %244 : vector<2x16xf32>
    %247 = vector.extract_strided_slice %236 {offsets = [0, 32], sizes = [2, 16], strides = [1, 1]} : vector<2x64xf32> to vector<2x16xf32>
    %248 = vector.extract_strided_slice %236 {offsets = [0, 48], sizes = [2, 16], strides = [1, 1]} : vector<2x64xf32> to vector<2x16xf32>
    %cst_104 = arith.constant 5.000000e-01 : f32
    %249 = vector.broadcast %cst_104 : f32 to vector<2x16xf32>
    %250 = arith.mulf %249, %248 : vector<2x16xf32>
    %cst_105 = arith.constant 5.000000e-01 : f32
    %251 = vector.broadcast %cst_105 : f32 to vector<2x16xf32>
    %252 = arith.addf %251, %250 : vector<2x16xf32>
    %253 = arith.mulf %246, %224 : vector<2x16xf32>
    %254 = arith.mulf %241, %247 : vector<2x16xf32>
    %255 = arith.addf %253, %254 : vector<2x16xf32>
    %256 = math.tanh %255 : vector<2x16xf32>
    %257 = arith.mulf %252, %256 : vector<2x16xf32>
    %cst_106 = arith.constant dense<0.000000e+00> : vector<2x128xf32>
    %258 = tpu.matmul %257, %0, %cst_106 {dimension_numbers = #tpu.dot_dimension_numbers<[1], [0], [0], [1], [0, 0, 1, 1], [], []>} : vector<2x16xf32>, vector<16x128xf32>, vector<2x128xf32> -> vector<2x128xf32>
    %259 = vector.extract_strided_slice %258 {offsets = [0, 64], sizes = [2, 3], strides = [1, 1]} : vector<2x128xf32> to vector<2x3xf32>
    %260 = vector.extract_strided_slice %2 {offsets = [0, 64], sizes = [1, 3], strides = [1, 1]} : vector<1x128xf32> to vector<1x3xf32>
    %261 = vector.broadcast %260 : vector<1x3xf32> to vector<2x3xf32>
    %262 = arith.addf %259, %261 : vector<2x3xf32>
    %c0_107 = arith.constant 0 : index
    %c7_108 = arith.constant 7 : index
    %c0_109 = arith.constant 0 : index
    %263 = vector.load %arg4[%c0_107, %c7_108, %c0_109] : memref<2x8x3xf32, #tpu.memory_space<vmem>>, vector<2x1x3xf32>
    %264 = vector.shape_cast %263 : vector<2x1x3xf32> to vector<2x3xf32>
    %265 = vector.shape_cast %262 : vector<2x3xf32> to vector<2x1x3xf32>
    tpu.vector_store %arg4[%c0_107, %c7_108, %c0_109], %265 {strides = array<i32>} : memref<2x8x3xf32, #tpu.memory_space<vmem>>, vector<2x1x3xf32>,
    %c0_110 = arith.constant 0 : index
    %c0_111 = arith.constant 0 : index
    %c0_112 = arith.constant 0 : index
    %266 = vector.load %arg5[%c0_110, %c0_111, %c0_112] : memref<1x2x16xf32, #tpu.memory_space<vmem>>, vector<1x2x16xf32>
    %267 = vector.shape_cast %266 : vector<1x2x16xf32> to vector<2x16xf32>
    %268 = vector.shape_cast %257 : vector<2x16xf32> to vector<1x2x16xf32>
    tpu.vector_store %arg5[%c0_110, %c0_111, %c0_112], %268 {strides = array<i32>} : memref<1x2x16xf32, #tpu.memory_space<vmem>>, vector<1x2x16xf32>,
    %c0_113 = arith.constant 0 : index
    %c0_114 = arith.constant 0 : index
    %c0_115 = arith.constant 0 : index
    %269 = vector.load %arg6[%c0_113, %c0_114, %c0_115] : memref<1x2x16xf32, #tpu.memory_space<vmem>>, vector<1x2x16xf32>
    %270 = vector.shape_cast %269 : vector<1x2x16xf32> to vector<2x16xf32>
    %271 = vector.shape_cast %255 : vector<2x16xf32> to vector<1x2x16xf32>
    tpu.vector_store %arg6[%c0_113, %c0_114, %c0_115], %271 {strides = array<i32>} : memref<1x2x16xf32, #tpu.memory_space<vmem>>, vector<1x2x16xf32>,
    return
  }
}

</mosaic_0001>

<llo_original>
// kernel: skewed_gaussian_rnn_forward.1
$region0: #{skewed_gaussian_rnn_forward.1}
  #allocation0 [shape = 'u32[]', space=smem, size = 0x4, offset = 0x4, fixed_abs, tag = 'smem constant byte address 0x4 - core index']
  #allocation1 [shape = 'u32[144,128]{1,0:T(1,128)}', space=vmem, size = 0x12000, scoped, tag = 'internal scratch']
  #allocation2 [shape = 'f32[2,8,128]{2,1,0:T(8,128)}', space=vmem, size = 0x2000, scoped, tag = 'scratch operand']
  %s0 = inlined_call_operand.vmem [shape: f32[2,8,1], index: 0, kind: input, shape index: {}]
  %s1 = inlined_call_operand.vmem [shape: f32[2,16], index: 1, kind: input, shape index: {}, may-alias: {1,2}]
  %s2 = inlined_call_operand.vmem [shape: f32[2,16], index: 2, kind: input, shape index: {}, may-alias: {1,2}]
  %s3 = inlined_call_operand.hbm [shape: f32[24,128], index: 3, kind: input, shape index: {}]
  %s4 = inlined_call_operand.vmem [shape: f32[2,8,3], index: 4, kind: output, shape index: {0}]
  %s5 = inlined_call_operand.hbm [shape: f32[1,2,16], index: 5, kind: output, shape index: {1}]
  %s6 = inlined_call_operand.hbm [shape: f32[1,2,16], index: 6, kind: output, shape index: {2}]
  %7 = xla_tuple %s4, %s5, %s6
  %s8 = sld [smem:[#allocation0]]
  $region46: #{skewed_gaussian_rnn_forward.1} parent=0
    _
  %s10 = ssub.s32 1, %s8
  %s11 = scalar_select 0, %s10, %s8
  $region1: #{skewed_gaussian_rnn_forward.1} parent=0
    #allocation3 [shape = 'u8[12288]{0}', space=vmem, size = 0x3000, scoped, tag = 'input window, operand 3, single buffered']
    #allocation4 [shape = 's32[1]{0}', space=sflag, size = 0x4, scoped, tag = 'scoped memory for skewed_gaussian_rnn_forward.1']
    #allocation5 [shape = 's32[1]{0}', space=sflag, size = 0x4, scoped, tag = 'scoped memory for skewed_gaussian_rnn_forward.1']
    #allocation6 [shape = 'u8[1024]{0}', space=vmem, size = 0x400, scoped, tag = 'output window, operand 1, single buffered']
    #allocation7 [shape = 'u8[1024]{0}', space=vmem, size = 0x400, scoped, tag = 'output window, operand 2, single buffered']
    #allocation8 [shape = 's32[1]{0}', space=sflag, size = 0x4, scoped, tag = 'scoped memory for skewed_gaussian_rnn_forward.1']
    %12 = vsyncpa [#allocation4], 0
    %13 = vsyncpa [#allocation5], 0
    %14 = vsyncpa [#allocation8], 0
    // Predicated region
    $region2: #{skewed_gaussian_rnn_forward.1} parent=1 // pred_check
      _
    $region3: #{skewed_gaussian_rnn_forward.1} parent=1 // pred_check_branch
      %16 = sbr.rel (0) target = $region5
    $region4: #{skewed_gaussian_rnn_forward.1} parent=1 // pred_region
      _
    $region5: #{skewed_gaussian_rnn_forward.1} parent=1 // pred_fallthru
      _
    // Predicated region
    $region6: #{skewed_gaussian_rnn_forward.1} parent=1 // pred_check
      _
    $region7: #{skewed_gaussian_rnn_forward.1} parent=1 // pred_check_branch
      %18 = sbr.rel (0) target = $region9
    $region8: #{skewed_gaussian_rnn_forward.1} parent=1 // pred_region
      _
    $region9: #{skewed_gaussian_rnn_forward.1} parent=1 // pred_fallthru
      _
    // Predicated region
    $region10: #{skewed_gaussian_rnn_forward.1} parent=1 // pred_check
      _
    $region11: #{skewed_gaussian_rnn_forward.1} parent=1 // pred_check_branch
      %20 = sbr.rel (0) target = $region13
    $region12: #{skewed_gaussian_rnn_forward.1} parent=1 // pred_region
      _
    $region13: #{skewed_gaussian_rnn_forward.1} parent=1 // pred_fallthru
      _
    // Predicated region
    $region14: #{skewed_gaussian_rnn_forward.1} parent=1 // pred_check
      _
    $region15: #{skewed_gaussian_rnn_forward.1} parent=1 // pred_check_branch
      %22 = sbr.rel (0) target = $region17
    $region16: #{skewed_gaussian_rnn_forward.1} parent=1 // pred_region
      %s24 = ssub.s32 384, 384
      %25 = vsyncadd [#allocation4], %s24
      %s26 = sshll.u32 [#allocation3], 4
      %s27 = int_to_ptr.vmem [resolvable:$true] %s26
      %32 = dma.hbm_to_vmem [thread:$0]  %s3, 384, %s27, [#allocation4], 128, 128, 8
    $region17: #{skewed_gaussian_rnn_forward.1} parent=1 // pred_fallthru
      _
    // Predicated region
    $region18: #{skewed_gaussian_rnn_forward.1} parent=1 // pred_check
      _
    $region19: #{skewed_gaussian_rnn_forward.1} parent=1 // pred_check_branch
      %34 = sbr.rel (0) target = $region21
    $region20: #{skewed_gaussian_rnn_forward.1} parent=1 // pred_region
      %35 = dma.done [#allocation4], 384
    $region21: #{skewed_gaussian_rnn_forward.1} parent=1 // pred_fallthru
      _
    %v36 = vld [vmem:[#allocation3] sm:$0xff]
    %v37 = vld [vmem:[#allocation3 + $0x8] sm:$0xff]
    %v38 = vld [vmem:[#allocation3 + $0x10] sm:$0x1]
    %v39 = vld [vmem:[#allocation3 + $0x11] sm:$0x1]
    %v40 = vld [vmem:[%s0] sm:$0xff]
    %v41 = vld [vmem:[%s0 + $0x8] sm:$0xff]
    %43 = vset.pattern.permute.xlu0 0
    %44 = vperm.xlu0 %43, %v40
    %v45 = vpop.permute.xlu0 %44
    %48 = vset.pattern.permute.xlu0 0
    %49 = vperm.xlu0 %48, %v41
    %v50 = vpop.permute.xlu0 %49
    %v52 = vlaneseq
    %v53 = vshrl.u32 %v52, 7
    %v54 = vsub.s32 0, %v53
    %v55 = vrot.slane %v38, %v54
    %v56 = vmul.f32 %v45, %v55
    %v57 = vmul.f32 %v50, %v55
    %v58 = vlaneseq
    %v59 = vshrl.u32 %v58, 7
    %v60 = vsub.s32 0, %v59
    %v61 = vrot.slane %v39, %v60
    %v62 = vadd.f32 %v56, %v61
    %v63 = vadd.f32 %v57, %v61
    %64 = vst [vmem:[#allocation2] sm:$0xff] %v62
    %65 = vst [vmem:[#allocation2 + $0x8] sm:$0xff] %v63
    %v66 = vld [vmem:[%s1] sm:$0x3]
    %v67 = vld [vmem:[%s2] sm:$0x3]
    %v68 = vld [vmem:[#allocation2] sm:$0x1]
    %v69 = vld [vmem:[#allocation2 + $0x8] sm:$0x1]
    %v72 = vrot.slane %v69, 7
    %vm73 = vcmask 1041409
    %v74 = vsel %vm73, %v72, %v68
    %vm76 = vcmask 130048
    %v78 = vsel %vm76, %v66, 0
    %80 = vmatprep.subr.mxu0 0.0
    %81 = vmatpush1.msra.mxu0 0.0
    %82 = vmatprep.subr.mxu0 0.0
    %83 = vmatpush1.msra.mxu0 0.0
    %84 = vmatprep.subr.mxu0 0.0
    %85 = vmatpush1.msra.mxu0 0.0
    %86 = vmatprep.subr.mxu0 0.0
    %87 = vmatpush1.msra.mxu0 0.0
    %88 = vmatprep.subr.mxu0 0.0
    %89 = vmatpush1.msra.mxu0 0.0
    %90 = vmatprep.subr.mxu0 0.0
    %91 = vmatpush1.msra.mxu0 0.0
    %92 = vmatprep.subr.mxu0 0.0
    %93 = vmatpush1.msra.mxu0 0.0
    %94 = vmatprep.subr.mxu0 0.0
    %95 = vmatpush1.msra.mxu0 0.0
    %96 = vmatprep.subr.mxu0 0.0
    %97 = vmatpush1.msra.mxu0 0.0
    %98 = vmatprep.subr.mxu0 0.0
    %99 = vmatpush1.msra.mxu0 0.0
    %100 = vmatprep.subr.mxu0 0.0
    %101 = vmatpush1.msra.mxu0 0.0
    %102 = vmatprep.subr.mxu0 0.0
    %103 = vmatpush1.msra.mxu0 0.0
    %104 = vmatprep.subr.mxu0 0.0
    %105 = vmatpush1.msra.mxu0 0.0
    %106 = vmatprep.subr.mxu0 0.0
    %107 = vmatpush1.msra.mxu0 0.0
    %108 = vmatprep.subr.mxu0 0.0
    %109 = vmatpush1.msra.mxu0 %v37
    %110 = vmatprep.subr.mxu0 0.0
    %111 = vmatpush1.msra.mxu0 %v36
    %112 = vmatprep.subr.mxu0 0.0
    %113 = vmatpush2.msra.mxu0 0.0
    %114 = vmatprep.subr.mxu0 0.0
    %115 = vmatpush2.msra.mxu0 0.0
    %116 = vmatprep.subr.mxu0 0.0
    %117 = vmatpush2.msra.mxu0 0.0
    %118 = vmatprep.subr.mxu0 0.0
    %119 = vmatpush2.msra.mxu0 0.0
    %120 = vmatprep.subr.mxu0 0.0
    %121 = vmatpush2.msra.mxu0 0.0
    %122 = vmatprep.subr.mxu0 0.0
    %123 = vmatpush2.msra.mxu0 0.0
    %124 = vmatprep.subr.mxu0 0.0
    %125 = vmatpush2.msra.mxu0 0.0
    %126 = vmatprep.subr.mxu0 0.0
    %127 = vmatpush2.msra.mxu0 0.0
    %128 = vmatprep.subr.mxu0 0.0
    %129 = vmatpush2.msra.mxu0 0.0
    %130 = vmatprep.subr.mxu0 0.0
    %131 = vmatpush2.msra.mxu0 0.0
    %132 = vmatprep.subr.mxu0 0.0
    %133 = vmatpush2.msra.mxu0 0.0
    %134 = vmatprep.subr.mxu0 0.0
    %135 = vmatpush2.msra.mxu0 0.0
    %136 = vmatprep.subr.mxu0 0.0
    %137 = vmatpush2.msra.mxu0 0.0
    %138 = vmatprep.subr.mxu0 0.0
    %139 = vmatpush2.msra.mxu0 0.0
    %140 = vmatprep.subr.mxu0 0.0
    %141 = vmatpush2.msra.mxu0 0.0
    %142 = vmatprep.subr.mxu0 0.0
    %143 = vmatpush2.msra.mxu0 0.0
    %144 = vmatprep.mubr.f32.mxu0 0.0
    %145 = vmatmul.mubr.f32.gmra.mxu0 %v78
    %v146 = vpop.f32.mrf.mxu0
    %v147 = vadd.f32 %v74, %v146
    %v148 = vpop.f32.mrf.mxu0
    %149 = vdwg.mxu0
    %v150 = vtanh.pop %v147
    %v151 = vmul.f32 %v150, 0.5
    %v152 = vadd.f32 %v151, 0.5
    %154 = vrot.lane.b32.xlu0 %v67, 16
    %v155 = vpop.permute.xlu0 %154
    %v157 = vmul.f32 %v152, %v155
    %159 = vrot.lane.b32.xlu0 %v150, 96
    %v160 = vpop.permute.xlu0 %159
    %v162 = vmul.f32 %v152, %v160
    %164 = vrot.lane.b32.xlu0 %v162, 16
    %v165 = vpop.permute.xlu0 %164
    %v167 = vadd.f32 %v157, %v165
    %v168 = vtanh.pop %v167
    %170 = vrot.lane.b32.xlu0 %v168, 32
    %v171 = vpop.permute.xlu0 %170
    %v173 = vmul.f32 %v152, %v171
    %v174 = vld [vmem:[#allocation2 + $0x1] sm:$0x1]
    %v175 = vld [vmem:[#allocation2 + $0x9] sm:$0x1]
    %177 = vrot.lane.b32.xlu0 %v173, 80
    %v178 = vpop.permute.xlu0 %177
    %v181 = vrot.slane %v175, 7
    %v182 = vsel %vm73, %v181, %v174
    %v184 = vsel %vm76, %v178, 0
    %186 = vmatprep.subr.mxu0 0.0
    %187 = vmatpush1.msra.mxu0 0.0
    %188 = vmatprep.subr.mxu0 0.0
    %189 = vmatpush1.msra.mxu0 0.0
    %190 = vmatprep.subr.mxu0 0.0
    %191 = vmatpush1.msra.mxu0 0.0
    %192 = vmatprep.subr.mxu0 0.0
    %193 = vmatpush1.msra.mxu0 0.0
    %194 = vmatprep.subr.mxu0 0.0
    %195 = vmatpush1.msra.mxu0 0.0
    %196 = vmatprep.subr.mxu0 0.0
    %197 = vmatpush1.msra.mxu0 0.0
    %198 = vmatprep.subr.mxu0 0.0
    %199 = vmatpush1.msra.mxu0 0.0
    %200 = vmatprep.subr.mxu0 0.0
    %201 = vmatpush1.msra.mxu0 0.0
    %202 = vmatprep.subr.mxu0 0.0
    %203 = vmatpush1.msra.mxu0 0.0
    %204 = vmatprep.subr.mxu0 0.0
    %205 = vmatpush1.msra.mxu0 0.0
    %206 = vmatprep.subr.mxu0 0.0
    %207 = vmatpush1.msra.mxu0 0.0
    %208 = vmatprep.subr.mxu0 0.0
    %209 = vmatpush1.msra.mxu0 0.0
    %210 = vmatprep.subr.mxu0 0.0
    %211 = vmatpush1.msra.mxu0 0.0
    %212 = vmatprep.subr.mxu0 0.0
    %213 = vmatpush1.msra.mxu0 0.0
    %214 = vmatprep.subr.mxu0 0.0
    %215 = vmatpush1.msra.mxu0 %v37
    %216 = vmatprep.subr.mxu0 0.0
    %217 = vmatpush1.msra.mxu0 %v36
    %218 = vmatprep.subr.mxu0 0.0
    %219 = vmatpush2.msra.mxu0 0.0
    %220 = vmatprep.subr.mxu0 0.0
    %221 = vmatpush2.msra.mxu0 0.0
    %222 = vmatprep.subr.mxu0 0.0
    %223 = vmatpush2.msra.mxu0 0.0
    %224 = vmatprep.subr.mxu0 0.0
    %225 = vmatpush2.msra.mxu0 0.0
    %226 = vmatprep.subr.mxu0 0.0
    %227 = vmatpush2.msra.mxu0 0.0
    %228 = vmatprep.subr.mxu0 0.0
    %229 = vmatpush2.msra.mxu0 0.0
    %230 = vmatprep.subr.mxu0 0.0
    %231 = vmatpush2.msra.mxu0 0.0
    %232 = vmatprep.subr.mxu0 0.0
    %233 = vmatpush2.msra.mxu0 0.0
    %234 = vmatprep.subr.mxu0 0.0
    %235 = vmatpush2.msra.mxu0 0.0
    %236 = vmatprep.subr.mxu0 0.0
    %237 = vmatpush2.msra.mxu0 0.0
    %238 = vmatprep.subr.mxu0 0.0
    %239 = vmatpush2.msra.mxu0 0.0
    %240 = vmatprep.subr.mxu0 0.0
    %241 = vmatpush2.msra.mxu0 0.0
    %242 = vmatprep.subr.mxu0 0.0
    %243 = vmatpush2.msra.mxu0 0.0
    %244 = vmatprep.subr.mxu0 0.0
    %245 = vmatpush2.msra.mxu0 0.0
    %246 = vmatprep.subr.mxu0 0.0
    %247 = vmatpush2.msra.mxu0 0.0
    %248 = vmatprep.subr.mxu0 0.0
    %249 = vmatpush2.msra.mxu0 0.0
    %250 = vmatprep.mubr.f32.mxu0 0.0
    %251 = vmatmul.mubr.f32.gmra.mxu0 %v184
    %v252 = vpop.f32.mrf.mxu0
    %v253 = vadd.f32 %v182, %v252
    %v254 = vpop.f32.mrf.mxu0
    %255 = vdwg.mxu0
    %v258 = vunpack.c.l.s4 1966171168
    %v259 = vunpack.c.0.s8 %v258
    %v260 = vlaneseq
    %v261 = vshrl.u32 %v260, 7
    %v262 = vsub.s32 %v259, %v261
    %v263 = vrot.slane %v253, %v262
    %v264 = vcombine.high %v263, %v263
    %v266 = vunpack.c.l.s4 1966171168
    %v267 = vunpack.c.0.s8 %v266
    %v268 = vlaneseq
    %v269 = vshrl.u32 %v268, 7
    %v270 = vsub.s32 %v267, %v269
    %v271 = vrot.slane %v263, %v270
    %v273 = vunpack.c.l.s4 1966171168
    %v274 = vunpack.c.0.s8 %v273
    %v275 = vlaneseq
    %v276 = vshrl.u32 %v275, 7
    %v277 = vsub.s32 %v274, %v276
    %v278 = vrot.slane %v264, %v277
    %v279 = vlaneseq
    %v280 = vshrl.u32 %v279, 7
    %v281 = vsub.s32 0, %v280
    %v282 = vrot.slane %v271, %v281
    %v283 = vlaneseq
    %v284 = vshrl.u32 %v283, 7
    %v285 = vsub.s32 0, %v284
    %v286 = vrot.slane %v278, %v285
    %287 = vrot.lane.b32.xlu0 %v282, 64
    %v288 = vpop.permute.xlu0 %287
    %289 = vrot.lane.b32.xlu0 %v286, 64
    %v290 = vpop.permute.xlu0 %289
    %vm293 = vcmask 16384
    %294 = vst.msk [vmem:[%s4] sm:$0x1] %vm293, %v288
    %295 = vst.msk [vmem:[%s4 + $0x8] sm:$0x1] %vm293, %v290
    %v296 = vtanh.pop %v253
    %v297 = vmul.f32 %v296, 0.5
    %v298 = vadd.f32 %v297, 0.5
    %v299 = vmul.f32 %v298, %v167
    %301 = vrot.lane.b32.xlu0 %v296, 96
    %v302 = vpop.permute.xlu0 %301
    %v304 = vmul.f32 %v298, %v302
    %306 = vrot.lane.b32.xlu0 %v304, 16
    %v307 = vpop.permute.xlu0 %306
    %v309 = vadd.f32 %v299, %v307
    %v310 = vtanh.pop %v309
    %312 = vrot.lane.b32.xlu0 %v310, 32
    %v313 = vpop.permute.xlu0 %312
    %v315 = vmul.f32 %v298, %v313
    %v316 = vld [vmem:[#allocation2 + $0x2] sm:$0x1]
    %v317 = vld [vmem:[#allocation2 + $0xa] sm:$0x1]
    %319 = vrot.lane.b32.xlu0 %v315, 80
    %v320 = vpop.permute.xlu0 %319
    %v323 = vrot.slane %v317, 7
    %v324 = vsel %vm73, %v323, %v316
    %v326 = vsel %vm76, %v320, 0
    %328 = vmatprep.subr.mxu0 0.0
    %329 = vmatpush1.msra.mxu0 0.0
    %330 = vmatprep.subr.mxu0 0.0
    %331 = vmatpush1.msra.mxu0 0.0
    %332 = vmatprep.subr.mxu0 0.0
    %333 = vmatpush1.msra.mxu0 0.0
    %334 = vmatprep.subr.mxu0 0.0
    %335 = vmatpush1.msra.mxu0 0.0
    %336 = vmatprep.subr.mxu0 0.0
    %337 = vmatpush1.msra.mxu0 0.0
    %338 = vmatprep.subr.mxu0 0.0
    %339 = vmatpush1.msra.mxu0 0.0
    %340 = vmatprep.subr.mxu0 0.0
    %341 = vmatpush1.msra.mxu0 0.0
    %342 = vmatprep.subr.mxu0 0.0
    %343 = vmatpush1.msra.mxu0 0.0
    %344 = vmatprep.subr.mxu0 0.0
    %345 = vmatpush1.msra.mxu0 0.0
    %346 = vmatprep.subr.mxu0 0.0
    %347 = vmatpush1.msra.mxu0 0.0
    %348 = vmatprep.subr.mxu0 0.0
    %349 = vmatpush1.msra.mxu0 0.0
    %350 = vmatprep.subr.mxu0 0.0
    %351 = vmatpush1.msra.mxu0 0.0
    %352 = vmatprep.subr.mxu0 0.0
    %353 = vmatpush1.msra.mxu0 0.0
    %354 = vmatprep.subr.mxu0 0.0
    %355 = vmatpush1.msra.mxu0 0.0
    %356 = vmatprep.subr.mxu0 0.0
    %357 = vmatpush1.msra.mxu0 %v37
    %358 = vmatprep.subr.mxu0 0.0
    %359 = vmatpush1.msra.mxu0 %v36
    %360 = vmatprep.subr.mxu0 0.0
    %361 = vmatpush2.msra.mxu0 0.0
    %362 = vmatprep.subr.mxu0 0.0
    %363 = vmatpush2.msra.mxu0 0.0
    %364 = vmatprep.subr.mxu0 0.0
    %365 = vmatpush2.msra.mxu0 0.0
    %366 = vmatprep.subr.mxu0 0.0
    %367 = vmatpush2.msra.mxu0 0.0
    %368 = vmatprep.subr.mxu0 0.0
    %369 = vmatpush2.msra.mxu0 0.0
    %370 = vmatprep.subr.mxu0 0.0
    %371 = vmatpush2.msra.mxu0 0.0
    %372 = vmatprep.subr.mxu0 0.0
    %373 = vmatpush2.msra.mxu0 0.0
    %374 = vmatprep.subr.mxu0 0.0
    %375 = vmatpush2.msra.mxu0 0.0
    %376 = vmatprep.subr.mxu0 0.0
    %377 = vmatpush2.msra.mxu0 0.0
    %378 = vmatprep.subr.mxu0 0.0
    %379 = vmatpush2.msra.mxu0 0.0
    %380 = vmatprep.subr.mxu0 0.0
    %381 = vmatpush2.msra.mxu0 0.0
    %382 = vmatprep.subr.mxu0 0.0
    %383 = vmatpush2.msra.mxu0 0.0
    %384 = vmatprep.subr.mxu0 0.0
    %385 = vmatpush2.msra.mxu0 0.0
    %386 = vmatprep.subr.mxu0 0.0
    %387 = vmatpush2.msra.mxu0 0.0
    %388 = vmatprep.subr.mxu0 0.0
    %389 = vmatpush2.msra.mxu0 0.0
    %390 = vmatprep.subr.mxu0 0.0
    %391 = vmatpush2.msra.mxu0 0.0
    %392 = vmatprep.mubr.f32.mxu0 0.0
    %393 = vmatmul.mubr.f32.gmra.mxu0 %v326
    %v394 = vpop.f32.mrf.mxu0
    %v395 = vadd.f32 %v324, %v394
    %v396 = vpop.f32.mrf.mxu0
    %397 = vdwg.mxu0
    %v400 = vunpack.c.l.s4 1966171168
    %v401 = vunpack.c.0.s8 %v400
    %v402 = vlaneseq
    %v403 = vshrl.u32 %v402, 7
    %v404 = vsub.s32 %v401, %v403
    %v405 = vrot.slane %v395, %v404
    %v406 = vcombine.high %v405, %v405
    %v408 = vunpack.c.l.s4 1966171168
    %v409 = vunpack.c.0.s8 %v408
    %v410 = vlaneseq
    %v411 = vshrl.u32 %v410, 7
    %v412 = vsub.s32 %v409, %v411
    %v413 = vrot.slane %v405, %v412
    %v415 = vunpack.c.l.s4 1966171168
    %v416 = vunpack.c.0.s8 %v415
    %v417 = vlaneseq
    %v418 = vshrl.u32 %v417, 7
    %v419 = vsub.s32 %v416, %v418
    %v420 = vrot.slane %v406, %v419
    %v421 = vlaneseq
    %v422 = vshrl.u32 %v421, 7
    %v423 = vsub.s32 0, %v422
    %v424 = vrot.slane %v413, %v423
    %v425 = vlaneseq
    %v426 = vshrl.u32 %v425, 7
    %v427 = vsub.s32 0, %v426
    %v428 = vrot.slane %v420, %v427
    %429 = vrot.lane.b32.xlu0 %v424, 64
    %v430 = vpop.permute.xlu0 %429
    %431 = vrot.lane.b32.xlu0 %v428, 64
    %v432 = vpop.permute.xlu0 %431
    %435 = vst.msk [vmem:[%s4 + $0x1] sm:$0x1] %vm293, %v430
    %436 = vst.msk [vmem:[%s4 + $0x9] sm:$0x1] %vm293, %v432
    %v437 = vtanh.pop %v395
    %v438 = vmul.f32 %v437, 0.5
    %v439 = vadd.f32 %v438, 0.5
    %v440 = vmul.f32 %v439, %v309
    %442 = vrot.lane.b32.xlu0 %v437, 96
    %v443 = vpop.permute.xlu0 %442
    %v445 = vmul.f32 %v439, %v443
    %447 = vrot.lane.b32.xlu0 %v445, 16
    %v448 = vpop.permute.xlu0 %447
    %v450 = vadd.f32 %v440, %v448
    %v451 = vtanh.pop %v450
    %453 = vrot.lane.b32.xlu0 %v451, 32
    %v454 = vpop.permute.xlu0 %453
    %v456 = vmul.f32 %v439, %v454
    %v457 = vld [vmem:[#allocation2 + $0x3] sm:$0x1]
    %v458 = vld [vmem:[#allocation2 + $0xb] sm:$0x1]
    %460 = vrot.lane.b32.xlu0 %v456, 80
    %v461 = vpop.permute.xlu0 %460
    %v464 = vrot.slane %v458, 7
    %v465 = vsel %vm73, %v464, %v457
    %v467 = vsel %vm76, %v461, 0
    %469 = vmatprep.subr.mxu0 0.0
    %470 = vmatpush1.msra.mxu0 0.0
    %471 = vmatprep.subr.mxu0 0.0
    %472 = vmatpush1.msra.mxu0 0.0
    %473 = vmatprep.subr.mxu0 0.0
    %474 = vmatpush1.msra.mxu0 0.0
    %475 = vmatprep.subr.mxu0 0.0
    %476 = vmatpush1.msra.mxu0 0.0
    %477 = vmatprep.subr.mxu0 0.0
    %478 = vmatpush1.msra.mxu0 0.0
    %479 = vmatprep.subr.mxu0 0.0
    %480 = vmatpush1.msra.mxu0 0.0
    %481 = vmatprep.subr.mxu0 0.0
    %482 = vmatpush1.msra.mxu0 0.0
    %483 = vmatprep.subr.mxu0 0.0
    %484 = vmatpush1.msra.mxu0 0.0
    %485 = vmatprep.subr.mxu0 0.0
    %486 = vmatpush1.msra.mxu0 0.0
    %487 = vmatprep.subr.mxu0 0.0
    %488 = vmatpush1.msra.mxu0 0.0
    %489 = vmatprep.subr.mxu0 0.0
    %490 = vmatpush1.msra.mxu0 0.0
    %491 = vmatprep.subr.mxu0 0.0
    %492 = vmatpush1.msra.mxu0 0.0
    %493 = vmatprep.subr.mxu0 0.0
    %494 = vmatpush1.msra.mxu0 0.0
    %495 = vmatprep.subr.mxu0 0.0
    %496 = vmatpush1.msra.mxu0 0.0
    %497 = vmatprep.subr.mxu0 0.0
    %498 = vmatpush1.msra.mxu0 %v37
    %499 = vmatprep.subr.mxu0 0.0
    %500 = vmatpush1.msra.mxu0 %v36
    %501 = vmatprep.subr.mxu0 0.0
    %502 = vmatpush2.msra.mxu0 0.0
    %503 = vmatprep.subr.mxu0 0.0
    %504 = vmatpush2.msra.mxu0 0.0
    %505 = vmatprep.subr.mxu0 0.0
    %506 = vmatpush2.msra.mxu0 0.0
    %507 = vmatprep.subr.mxu0 0.0
    %508 = vmatpush2.msra.mxu0 0.0
    %509 = vmatprep.subr.mxu0 0.0
    %510 = vmatpush2.msra.mxu0 0.0
    %511 = vmatprep.subr.mxu0 0.0
    %512 = vmatpush2.msra.mxu0 0.0
    %513 = vmatprep.subr.mxu0 0.0
    %514 = vmatpush2.msra.mxu0 0.0
    %515 = vmatprep.subr.mxu0 0.0
    %516 = vmatpush2.msra.mxu0 0.0
    %517 = vmatprep.subr.mxu0 0.0
    %518 = vmatpush2.msra.mxu0 0.0
    %519 = vmatprep.subr.mxu0 0.0
    %520 = vmatpush2.msra.mxu0 0.0
    %521 = vmatprep.subr.mxu0 0.0
    %522 = vmatpush2.msra.mxu0 0.0
    %523 = vmatprep.subr.mxu0 0.0
    %524 = vmatpush2.msra.mxu0 0.0
    %525 = vmatprep.subr.mxu0 0.0
    %526 = vmatpush2.msra.mxu0 0.0
    %527 = vmatprep.subr.mxu0 0.0
    %528 = vmatpush2.msra.mxu0 0.0
    %529 = vmatprep.subr.mxu0 0.0
    %530 = vmatpush2.msra.mxu0 0.0
    %531 = vmatprep.subr.mxu0 0.0
    %532 = vmatpush2.msra.mxu0 0.0
    %533 = vmatprep.mubr.f32.mxu0 0.0
    %534 = vmatmul.mubr.f32.gmra.mxu0 %v467
    %v535 = vpop.f32.mrf.mxu0
    %v536 = vadd.f32 %v465, %v535
    %v537 = vpop.f32.mrf.mxu0
    %538 = vdwg.mxu0
    %v541 = vunpack.c.l.s4 1966171168
    %v542 = vunpack.c.0.s8 %v541
    %v543 = vlaneseq
    %v544 = vshrl.u32 %v543, 7
    %v545 = vsub.s32 %v542, %v544
    %v546 = vrot.slane %v536, %v545
    %v547 = vcombine.high %v546, %v546
    %v549 = vunpack.c.l.s4 1966171168
    %v550 = vunpack.c.0.s8 %v549
    %v551 = vlaneseq
    %v552 = vshrl.u32 %v551, 7
    %v553 = vsub.s32 %v550, %v552
    %v554 = vrot.slane %v546, %v553
    %v556 = vunpack.c.l.s4 1966171168
    %v557 = vunpack.c.0.s8 %v556
    %v558 = vlaneseq
    %v559 = vshrl.u32 %v558, 7
    %v560 = vsub.s32 %v557, %v559
    %v561 = vrot.slane %v547, %v560
    %v562 = vlaneseq
    %v563 = vshrl.u32 %v562, 7
    %v564 = vsub.s32 0, %v563
    %v565 = vrot.slane %v554, %v564
    %v566 = vlaneseq
    %v567 = vshrl.u32 %v566, 7
    %v568 = vsub.s32 0, %v567
    %v569 = vrot.slane %v561, %v568
    %570 = vrot.lane.b32.xlu0 %v565, 64
    %v571 = vpop.permute.xlu0 %570
    %572 = vrot.lane.b32.xlu0 %v569, 64
    %v573 = vpop.permute.xlu0 %572
    %576 = vst.msk [vmem:[%s4 + $0x2] sm:$0x1] %vm293, %v571
    %577 = vst.msk [vmem:[%s4 + $0xa] sm:$0x1] %vm293, %v573
    %v578 = vtanh.pop %v536
    %v579 = vmul.f32 %v578, 0.5
    %v580 = vadd.f32 %v579, 0.5
    %v581 = vmul.f32 %v580, %v450
    %583 = vrot.lane.b32.xlu0 %v578, 96
    %v584 = vpop.permute.xlu0 %583
    %v586 = vmul.f32 %v580, %v584
    %588 = vrot.lane.b32.xlu0 %v586, 16
    %v589 = vpop.permute.xlu0 %588
    %v591 = vadd.f32 %v581, %v589
    %v592 = vtanh.pop %v591
    %594 = vrot.lane.b32.xlu0 %v592, 32
    %v595 = vpop.permute.xlu0 %594
    %v597 = vmul.f32 %v580, %v595
    %v598 = vld [vmem:[#allocation2 + $0x4] sm:$0x1]
    %v599 = vld [vmem:[#allocation2 + $0xc] sm:$0x1]
    %601 = vrot.lane.b32.xlu0 %v597, 80
    %v602 = vpop.permute.xlu0 %601
    %v605 = vrot.slane %v599, 7
    %v606 = vsel %vm73, %v605, %v598
    %v608 = vsel %vm76, %v602, 0
    %610 = vmatprep.subr.mxu0 0.0
    %611 = vmatpush1.msra.mxu0 0.0
    %612 = vmatprep.subr.mxu0 0.0
    %613 = vmatpush1.msra.mxu0 0.0
    %614 = vmatprep.subr.mxu0 0.0
    %615 = vmatpush1.msra.mxu0 0.0
    %616 = vmatprep.subr.mxu0 0.0
    %617 = vmatpush1.msra.mxu0 0.0
    %618 = vmatprep.subr.mxu0 0.0
    %619 = vmatpush1.msra.mxu0 0.0
    %620 = vmatprep.subr.mxu0 0.0
    %621 = vmatpush1.msra.mxu0 0.0
    %622 = vmatprep.subr.mxu0 0.0
    %623 = vmatpush1.msra.mxu0 0.0
    %624 = vmatprep.subr.mxu0 0.0
    %625 = vmatpush1.msra.mxu0 0.0
    %626 = vmatprep.subr.mxu0 0.0
    %627 = vmatpush1.msra.mxu0 0.0
    %628 = vmatprep.subr.mxu0 0.0
    %629 = vmatpush1.msra.mxu0 0.0
    %630 = vmatprep.subr.mxu0 0.0
    %631 = vmatpush1.msra.mxu0 0.0
    %632 = vmatprep.subr.mxu0 0.0
    %633 = vmatpush1.msra.mxu0 0.0
    %634 = vmatprep.subr.mxu0 0.0
    %635 = vmatpush1.msra.mxu0 0.0
    %636 = vmatprep.subr.mxu0 0.0
    %637 = vmatpush1.msra.mxu0 0.0
    %638 = vmatprep.subr.mxu0 0.0
    %639 = vmatpush1.msra.mxu0 %v37
    %640 = vmatprep.subr.mxu0 0.0
    %641 = vmatpush1.msra.mxu0 %v36
    %642 = vmatprep.subr.mxu0 0.0
    %643 = vmatpush2.msra.mxu0 0.0
    %644 = vmatprep.subr.mxu0 0.0
    %645 = vmatpush2.msra.mxu0 0.0
    %646 = vmatprep.subr.mxu0 0.0
    %647 = vmatpush2.msra.mxu0 0.0
    %648 = vmatprep.subr.mxu0 0.0
    %649 = vmatpush2.msra.mxu0 0.0
    %650 = vmatprep.subr.mxu0 0.0
    %651 = vmatpush2.msra.mxu0 0.0
    %652 = vmatprep.subr.mxu0 0.0
    %653 = vmatpush2.msra.mxu0 0.0
    %654 = vmatprep.subr.mxu0 0.0
    %655 = vmatpush2.msra.mxu0 0.0
    %656 = vmatprep.subr.mxu0 0.0
    %657 = vmatpush2.msra.mxu0 0.0
    %658 = vmatprep.subr.mxu0 0.0
    %659 = vmatpush2.msra.mxu0 0.0
    %660 = vmatprep.subr.mxu0 0.0
    %661 = vmatpush2.msra.mxu0 0.0
    %662 = vmatprep.subr.mxu0 0.0
    %663 = vmatpush2.msra.mxu0 0.0
    %664 = vmatprep.subr.mxu0 0.0
    %665 = vmatpush2.msra.mxu0 0.0
    %666 = vmatprep.subr.mxu0 0.0
    %667 = vmatpush2.msra.mxu0 0.0
    %668 = vmatprep.subr.mxu0 0.0
    %669 = vmatpush2.msra.mxu0 0.0
    %670 = vmatprep.subr.mxu0 0.0
    %671 = vmatpush2.msra.mxu0 0.0
    %672 = vmatprep.subr.mxu0 0.0
    %673 = vmatpush2.msra.mxu0 0.0
    %674 = vmatprep.mubr.f32.mxu0 0.0
    %675 = vmatmul.mubr.f32.gmra.mxu0 %v608
    %v676 = vpop.f32.mrf.mxu0
    %v677 = vadd.f32 %v606, %v676
    %v678 = vpop.f32.mrf.mxu0
    %679 = vdwg.mxu0
    %v682 = vunpack.c.l.s4 1966171168
    %v683 = vunpack.c.0.s8 %v682
    %v684 = vlaneseq
    %v685 = vshrl.u32 %v684, 7
    %v686 = vsub.s32 %v683, %v685
    %v687 = vrot.slane %v677, %v686
    %v688 = vcombine.high %v687, %v687
    %v690 = vunpack.c.l.s4 1966171168
    %v691 = vunpack.c.0.s8 %v690
    %v692 = vlaneseq
    %v693 = vshrl.u32 %v692, 7
    %v694 = vsub.s32 %v691, %v693
    %v695 = vrot.slane %v687, %v694
    %v697 = vunpack.c.l.s4 1966171168
    %v698 = vunpack.c.0.s8 %v697
    %v699 = vlaneseq
    %v700 = vshrl.u32 %v699, 7
    %v701 = vsub.s32 %v698, %v700
    %v702 = vrot.slane %v688, %v701
    %v703 = vlaneseq
    %v704 = vshrl.u32 %v703, 7
    %v705 = vsub.s32 0, %v704
    %v706 = vrot.slane %v695, %v705
    %v707 = vlaneseq
    %v708 = vshrl.u32 %v707, 7
    %v709 = vsub.s32 0, %v708
    %v710 = vrot.slane %v702, %v709
    %711 = vrot.lane.b32.xlu0 %v706, 64
    %v712 = vpop.permute.xlu0 %711
    %713 = vrot.lane.b32.xlu0 %v710, 64
    %v714 = vpop.permute.xlu0 %713
    %717 = vst.msk [vmem:[%s4 + $0x3] sm:$0x1] %vm293, %v712
    %718 = vst.msk [vmem:[%s4 + $0xb] sm:$0x1] %vm293, %v714
    %v719 = vtanh.pop %v677
    %v720 = vmul.f32 %v719, 0.5
    %v721 = vadd.f32 %v720, 0.5
    %v722 = vmul.f32 %v721, %v591
    %724 = vrot.lane.b32.xlu0 %v719, 96
    %v725 = vpop.permute.xlu0 %724
    %v727 = vmul.f32 %v721, %v725
    %729 = vrot.lane.b32.xlu0 %v727, 16
    %v730 = vpop.permute.xlu0 %729
    %v732 = vadd.f32 %v722, %v730
    %v733 = vtanh.pop %v732
    %735 = vrot.lane.b32.xlu0 %v733, 32
    %v736 = vpop.permute.xlu0 %735
    %v738 = vmul.f32 %v721, %v736
    %v739 = vld [vmem:[#allocation2 + $0x5] sm:$0x1]
    %v740 = vld [vmem:[#allocation2 + $0xd] sm:$0x1]
    %742 = vrot.lane.b32.xlu0 %v738, 80
    %v743 = vpop.permute.xlu0 %742
    %v746 = vrot.slane %v740, 7
    %v747 = vsel %vm73, %v746, %v739
    %v749 = vsel %vm76, %v743, 0
    %751 = vmatprep.subr.mxu0 0.0
    %752 = vmatpush1.msra.mxu0 0.0
    %753 = vmatprep.subr.mxu0 0.0
    %754 = vmatpush1.msra.mxu0 0.0
    %755 = vmatprep.subr.mxu0 0.0
    %756 = vmatpush1.msra.mxu0 0.0
    %757 = vmatprep.subr.mxu0 0.0
    %758 = vmatpush1.msra.mxu0 0.0
    %759 = vmatprep.subr.mxu0 0.0
    %760 = vmatpush1.msra.mxu0 0.0
    %761 = vmatprep.subr.mxu0 0.0
    %762 = vmatpush1.msra.mxu0 0.0
    %763 = vmatprep.subr.mxu0 0.0
    %764 = vmatpush1.msra.mxu0 0.0
    %765 = vmatprep.subr.mxu0 0.0
    %766 = vmatpush1.msra.mxu0 0.0
    %767 = vmatprep.subr.mxu0 0.0
    %768 = vmatpush1.msra.mxu0 0.0
    %769 = vmatprep.subr.mxu0 0.0
    %770 = vmatpush1.msra.mxu0 0.0
    %771 = vmatprep.subr.mxu0 0.0
    %772 = vmatpush1.msra.mxu0 0.0
    %773 = vmatprep.subr.mxu0 0.0
    %774 = vmatpush1.msra.mxu0 0.0
    %775 = vmatprep.subr.mxu0 0.0
    %776 = vmatpush1.msra.mxu0 0.0
    %777 = vmatprep.subr.mxu0 0.0
    %778 = vmatpush1.msra.mxu0 0.0
    %779 = vmatprep.subr.mxu0 0.0
    %780 = vmatpush1.msra.mxu0 %v37
    %781 = vmatprep.subr.mxu0 0.0
    %782 = vmatpush1.msra.mxu0 %v36
    %783 = vmatprep.subr.mxu0 0.0
    %784 = vmatpush2.msra.mxu0 0.0
    %785 = vmatprep.subr.mxu0 0.0
    %786 = vmatpush2.msra.mxu0 0.0
    %787 = vmatprep.subr.mxu0 0.0
    %788 = vmatpush2.msra.mxu0 0.0
    %789 = vmatprep.subr.mxu0 0.0
    %790 = vmatpush2.msra.mxu0 0.0
    %791 = vmatprep.subr.mxu0 0.0
    %792 = vmatpush2.msra.mxu0 0.0
    %793 = vmatprep.subr.mxu0 0.0
    %794 = vmatpush2.msra.mxu0 0.0
    %795 = vmatprep.subr.mxu0 0.0
    %796 = vmatpush2.msra.mxu0 0.0
    %797 = vmatprep.subr.mxu0 0.0
    %798 = vmatpush2.msra.mxu0 0.0
    %799 = vmatprep.subr.mxu0 0.0
    %800 = vmatpush2.msra.mxu0 0.0
    %801 = vmatprep.subr.mxu0 0.0
    %802 = vmatpush2.msra.mxu0 0.0
    %803 = vmatprep.subr.mxu0 0.0
    %804 = vmatpush2.msra.mxu0 0.0
    %805 = vmatprep.subr.mxu0 0.0
    %806 = vmatpush2.msra.mxu0 0.0
    %807 = vmatprep.subr.mxu0 0.0
    %808 = vmatpush2.msra.mxu0 0.0
    %809 = vmatprep.subr.mxu0 0.0
    %810 = vmatpush2.msra.mxu0 0.0
    %811 = vmatprep.subr.mxu0 0.0
    %812 = vmatpush2.msra.mxu0 0.0
    %813 = vmatprep.subr.mxu0 0.0
    %814 = vmatpush2.msra.mxu0 0.0
    %815 = vmatprep.mubr.f32.mxu0 0.0
    %816 = vmatmul.mubr.f32.gmra.mxu0 %v749
    %v817 = vpop.f32.mrf.mxu0
    %v818 = vadd.f32 %v747, %v817
    %v819 = vpop.f32.mrf.mxu0
    %820 = vdwg.mxu0
    %v823 = vunpack.c.l.s4 1966171168
    %v824 = vunpack.c.0.s8 %v823
    %v825 = vlaneseq
    %v826 = vshrl.u32 %v825, 7
    %v827 = vsub.s32 %v824, %v826
    %v828 = vrot.slane %v818, %v827
    %v829 = vcombine.high %v828, %v828
    %v831 = vunpack.c.l.s4 1966171168
    %v832 = vunpack.c.0.s8 %v831
    %v833 = vlaneseq
    %v834 = vshrl.u32 %v833, 7
    %v835 = vsub.s32 %v832, %v834
    %v836 = vrot.slane %v828, %v835
    %v838 = vunpack.c.l.s4 1966171168
    %v839 = vunpack.c.0.s8 %v838
    %v840 = vlaneseq
    %v841 = vshrl.u32 %v840, 7
    %v842 = vsub.s32 %v839, %v841
    %v843 = vrot.slane %v829, %v842
    %v844 = vlaneseq
    %v845 = vshrl.u32 %v844, 7
    %v846 = vsub.s32 0, %v845
    %v847 = vrot.slane %v836, %v846
    %v848 = vlaneseq
    %v849 = vshrl.u32 %v848, 7
    %v850 = vsub.s32 0, %v849
    %v851 = vrot.slane %v843, %v850
    %852 = vrot.lane.b32.xlu0 %v847, 64
    %v853 = vpop.permute.xlu0 %852
    %854 = vrot.lane.b32.xlu0 %v851, 64
    %v855 = vpop.permute.xlu0 %854
    %858 = vst.msk [vmem:[%s4 + $0x4] sm:$0x1] %vm293, %v853
    %859 = vst.msk [vmem:[%s4 + $0xc] sm:$0x1] %vm293, %v855
    %v860 = vtanh.pop %v818
    %v861 = vmul.f32 %v860, 0.5
    %v862 = vadd.f32 %v861, 0.5
    %v863 = vmul.f32 %v862, %v732
    %865 = vrot.lane.b32.xlu0 %v860, 96
    %v866 = vpop.permute.xlu0 %865
    %v868 = vmul.f32 %v862, %v866
    %870 = vrot.lane.b32.xlu0 %v868, 16
    %v871 = vpop.permute.xlu0 %870
    %v873 = vadd.f32 %v863, %v871
    %v874 = vtanh.pop %v873
    %876 = vrot.lane.b32.xlu0 %v874, 32
    %v877 = vpop.permute.xlu0 %876
    %v879 = vmul.f32 %v862, %v877
    %v880 = vld [vmem:[#allocation2 + $0x6] sm:$0x1]
    %v881 = vld [vmem:[#allocation2 + $0xe] sm:$0x1]
    %883 = vrot.lane.b32.xlu0 %v879, 80
    %v884 = vpop.permute.xlu0 %883
    %v887 = vrot.slane %v881, 7
    %v888 = vsel %vm73, %v887, %v880
    %v890 = vsel %vm76, %v884, 0
    %892 = vmatprep.subr.mxu0 0.0
    %893 = vmatpush1.msra.mxu0 0.0
    %894 = vmatprep.subr.mxu0 0.0
    %895 = vmatpush1.msra.mxu0 0.0
    %896 = vmatprep.subr.mxu0 0.0
    %897 = vmatpush1.msra.mxu0 0.0
    %898 = vmatprep.subr.mxu0 0.0
    %899 = vmatpush1.msra.mxu0 0.0
    %900 = vmatprep.subr.mxu0 0.0
    %901 = vmatpush1.msra.mxu0 0.0
    %902 = vmatprep.subr.mxu0 0.0
    %903 = vmatpush1.msra.mxu0 0.0
    %904 = vmatprep.subr.mxu0 0.0
    %905 = vmatpush1.msra.mxu0 0.0
    %906 = vmatprep.subr.mxu0 0.0
    %907 = vmatpush1.msra.mxu0 0.0
    %908 = vmatprep.subr.mxu0 0.0
    %909 = vmatpush1.msra.mxu0 0.0
    %910 = vmatprep.subr.mxu0 0.0
    %911 = vmatpush1.msra.mxu0 0.0
    %912 = vmatprep.subr.mxu0 0.0
    %913 = vmatpush1.msra.mxu0 0.0
    %914 = vmatprep.subr.mxu0 0.0
    %915 = vmatpush1.msra.mxu0 0.0
    %916 = vmatprep.subr.mxu0 0.0
    %917 = vmatpush1.msra.mxu0 0.0
    %918 = vmatprep.subr.mxu0 0.0
    %919 = vmatpush1.msra.mxu0 0.0
    %920 = vmatprep.subr.mxu0 0.0
    %921 = vmatpush1.msra.mxu0 %v37
    %922 = vmatprep.subr.mxu0 0.0
    %923 = vmatpush1.msra.mxu0 %v36
    %924 = vmatprep.subr.mxu0 0.0
    %925 = vmatpush2.msra.mxu0 0.0
    %926 = vmatprep.subr.mxu0 0.0
    %927 = vmatpush2.msra.mxu0 0.0
    %928 = vmatprep.subr.mxu0 0.0
    %929 = vmatpush2.msra.mxu0 0.0
    %930 = vmatprep.subr.mxu0 0.0
    %931 = vmatpush2.msra.mxu0 0.0
    %932 = vmatprep.subr.mxu0 0.0
    %933 = vmatpush2.msra.mxu0 0.0
    %934 = vmatprep.subr.mxu0 0.0
    %935 = vmatpush2.msra.mxu0 0.0
    %936 = vmatprep.subr.mxu0 0.0
    %937 = vmatpush2.msra.mxu0 0.0
    %938 = vmatprep.subr.mxu0 0.0
    %939 = vmatpush2.msra.mxu0 0.0
    %940 = vmatprep.subr.mxu0 0.0
    %941 = vmatpush2.msra.mxu0 0.0
    %942 = vmatprep.subr.mxu0 0.0
    %943 = vmatpush2.msra.mxu0 0.0
    %944 = vmatprep.subr.mxu0 0.0
    %945 = vmatpush2.msra.mxu0 0.0
    %946 = vmatprep.subr.mxu0 0.0
    %947 = vmatpush2.msra.mxu0 0.0
    %948 = vmatprep.subr.mxu0 0.0
    %949 = vmatpush2.msra.mxu0 0.0
    %950 = vmatprep.subr.mxu0 0.0
    %951 = vmatpush2.msra.mxu0 0.0
    %952 = vmatprep.subr.mxu0 0.0
    %953 = vmatpush2.msra.mxu0 0.0
    %954 = vmatprep.subr.mxu0 0.0
    %955 = vmatpush2.msra.mxu0 0.0
    %956 = vmatprep.mubr.f32.mxu0 0.0
    %957 = vmatmul.mubr.f32.gmra.mxu0 %v890
    %v958 = vpop.f32.mrf.mxu0
    %v959 = vadd.f32 %v888, %v958
    %v960 = vpop.f32.mrf.mxu0
    %961 = vdwg.mxu0
    %v964 = vunpack.c.l.s4 1966171168
    %v965 = vunpack.c.0.s8 %v964
    %v966 = vlaneseq
    %v967 = vshrl.u32 %v966, 7
    %v968 = vsub.s32 %v965, %v967
    %v969 = vrot.slane %v959, %v968
    %v970 = vcombine.high %v969, %v969
    %v972 = vunpack.c.l.s4 1966171168
    %v973 = vunpack.c.0.s8 %v972
    %v974 = vlaneseq
    %v975 = vshrl.u32 %v974, 7
    %v976 = vsub.s32 %v973, %v975
    %v977 = vrot.slane %v969, %v976
    %v979 = vunpack.c.l.s4 1966171168
    %v980 = vunpack.c.0.s8 %v979
    %v981 = vlaneseq
    %v982 = vshrl.u32 %v981, 7
    %v983 = vsub.s32 %v980, %v982
    %v984 = vrot.slane %v970, %v983
    %v985 = vlaneseq
    %v986 = vshrl.u32 %v985, 7
    %v987 = vsub.s32 0, %v986
    %v988 = vrot.slane %v977, %v987
    %v989 = vlaneseq
    %v990 = vshrl.u32 %v989, 7
    %v991 = vsub.s32 0, %v990
    %v992 = vrot.slane %v984, %v991
    %993 = vrot.lane.b32.xlu0 %v988, 64
    %v994 = vpop.permute.xlu0 %993
    %995 = vrot.lane.b32.xlu0 %v992, 64
    %v996 = vpop.permute.xlu0 %995
    %999 = vst.msk [vmem:[%s4 + $0x5] sm:$0x1] %vm293, %v994
    %1000 = vst.msk [vmem:[%s4 + $0xd] sm:$0x1] %vm293, %v996
    %v1001 = vtanh.pop %v959
    %v1002 = vmul.f32 %v1001, 0.5
    %v1003 = vadd.f32 %v1002, 0.5
    %v1004 = vmul.f32 %v1003, %v873
    %1006 = vrot.lane.b32.xlu0 %v1001, 96
    %v1007 = vpop.permute.xlu0 %1006
    %v1009 = vmul.f32 %v1003, %v1007
    %1011 = vrot.lane.b32.xlu0 %v1009, 16
    %v1012 = vpop.permute.xlu0 %1011
    %v1014 = vadd.f32 %v1004, %v1012
    %v1015 = vtanh.pop %v1014
    %1017 = vrot.lane.b32.xlu0 %v1015, 32
    %v1018 = vpop.permute.xlu0 %1017
    %v1020 = vmul.f32 %v1003, %v1018
    %v1021 = vld [vmem:[#allocation2 + $0x7] sm:$0x1]
    %v1022 = vld [vmem:[#allocation2 + $0xf] sm:$0x1]
    %1024 = vrot.lane.b32.xlu0 %v1020, 80
    %v1025 = vpop.permute.xlu0 %1024
    %v1028 = vrot.slane %v1022, 7
    %v1029 = vsel %vm73, %v1028, %v1021
    %v1031 = vsel %vm76, %v1025, 0
    %1033 = vmatprep.subr.mxu0 0.0
    %1034 = vmatpush1.msra.mxu0 0.0
    %1035 = vmatprep.subr.mxu0 0.0
    %1036 = vmatpush1.msra.mxu0 0.0
    %1037 = vmatprep.subr.mxu0 0.0
    %1038 = vmatpush1.msra.mxu0 0.0
    %1039 = vmatprep.subr.mxu0 0.0
    %1040 = vmatpush1.msra.mxu0 0.0
    %1041 = vmatprep.subr.mxu0 0.0
    %1042 = vmatpush1.msra.mxu0 0.0
    %1043 = vmatprep.subr.mxu0 0.0
    %1044 = vmatpush1.msra.mxu0 0.0
    %1045 = vmatprep.subr.mxu0 0.0
    %1046 = vmatpush1.msra.mxu0 0.0
    %1047 = vmatprep.subr.mxu0 0.0
    %1048 = vmatpush1.msra.mxu0 0.0
    %1049 = vmatprep.subr.mxu0 0.0
    %1050 = vmatpush1.msra.mxu0 0.0
    %1051 = vmatprep.subr.mxu0 0.0
    %1052 = vmatpush1.msra.mxu0 0.0
    %1053 = vmatprep.subr.mxu0 0.0
    %1054 = vmatpush1.msra.mxu0 0.0
    %1055 = vmatprep.subr.mxu0 0.0
    %1056 = vmatpush1.msra.mxu0 0.0
    %1057 = vmatprep.subr.mxu0 0.0
    %1058 = vmatpush1.msra.mxu0 0.0
    %1059 = vmatprep.subr.mxu0 0.0
    %1060 = vmatpush1.msra.mxu0 0.0
    %1061 = vmatprep.subr.mxu0 0.0
    %1062 = vmatpush1.msra.mxu0 %v37
    %1063 = vmatprep.subr.mxu0 0.0
    %1064 = vmatpush1.msra.mxu0 %v36
    %1065 = vmatprep.subr.mxu0 0.0
    %1066 = vmatpush2.msra.mxu0 0.0
    %1067 = vmatprep.subr.mxu0 0.0
    %1068 = vmatpush2.msra.mxu0 0.0
    %1069 = vmatprep.subr.mxu0 0.0
    %1070 = vmatpush2.msra.mxu0 0.0
    %1071 = vmatprep.subr.mxu0 0.0
    %1072 = vmatpush2.msra.mxu0 0.0
    %1073 = vmatprep.subr.mxu0 0.0
    %1074 = vmatpush2.msra.mxu0 0.0
    %1075 = vmatprep.subr.mxu0 0.0
    %1076 = vmatpush2.msra.mxu0 0.0
    %1077 = vmatprep.subr.mxu0 0.0
    %1078 = vmatpush2.msra.mxu0 0.0
    %1079 = vmatprep.subr.mxu0 0.0
    %1080 = vmatpush2.msra.mxu0 0.0
    %1081 = vmatprep.subr.mxu0 0.0
    %1082 = vmatpush2.msra.mxu0 0.0
    %1083 = vmatprep.subr.mxu0 0.0
    %1084 = vmatpush2.msra.mxu0 0.0
    %1085 = vmatprep.subr.mxu0 0.0
    %1086 = vmatpush2.msra.mxu0 0.0
    %1087 = vmatprep.subr.mxu0 0.0
    %1088 = vmatpush2.msra.mxu0 0.0
    %1089 = vmatprep.subr.mxu0 0.0
    %1090 = vmatpush2.msra.mxu0 0.0
    %1091 = vmatprep.subr.mxu0 0.0
    %1092 = vmatpush2.msra.mxu0 0.0
    %1093 = vmatprep.subr.mxu0 0.0
    %1094 = vmatpush2.msra.mxu0 0.0
    %1095 = vmatprep.subr.mxu0 0.0
    %1096 = vmatpush2.msra.mxu0 0.0
    %1097 = vmatprep.mubr.f32.mxu0 0.0
    %1098 = vmatmul.mubr.f32.gmra.mxu0 %v1031
    %v1099 = vpop.f32.mrf.mxu0
    %v1100 = vadd.f32 %v1029, %v1099
    %v1101 = vpop.f32.mrf.mxu0
    %1102 = vdwg.mxu0
    %v1105 = vunpack.c.l.s4 1966171168
    %v1106 = vunpack.c.0.s8 %v1105
    %v1107 = vlaneseq
    %v1108 = vshrl.u32 %v1107, 7
    %v1109 = vsub.s32 %v1106, %v1108
    %v1110 = vrot.slane %v1100, %v1109
    %v1111 = vcombine.high %v1110, %v1110
    %v1113 = vunpack.c.l.s4 1966171168
    %v1114 = vunpack.c.0.s8 %v1113
    %v1115 = vlaneseq
    %v1116 = vshrl.u32 %v1115, 7
    %v1117 = vsub.s32 %v1114, %v1116
    %v1118 = vrot.slane %v1110, %v1117
    %v1120 = vunpack.c.l.s4 1966171168
    %v1121 = vunpack.c.0.s8 %v1120
    %v1122 = vlaneseq
    %v1123 = vshrl.u32 %v1122, 7
    %v1124 = vsub.s32 %v1121, %v1123
    %v1125 = vrot.slane %v1111, %v1124
    %v1126 = vlaneseq
    %v1127 = vshrl.u32 %v1126, 7
    %v1128 = vsub.s32 0, %v1127
    %v1129 = vrot.slane %v1118, %v1128
    %v1130 = vlaneseq
    %v1131 = vshrl.u32 %v1130, 7
    %v1132 = vsub.s32 0, %v1131
    %v1133 = vrot.slane %v1125, %v1132
    %1134 = vrot.lane.b32.xlu0 %v1129, 64
    %v1135 = vpop.permute.xlu0 %1134
    %1136 = vrot.lane.b32.xlu0 %v1133, 64
    %v1137 = vpop.permute.xlu0 %1136
    %1140 = vst.msk [vmem:[%s4 + $0x6] sm:$0x1] %vm293, %v1135
    %1141 = vst.msk [vmem:[%s4 + $0xe] sm:$0x1] %vm293, %v1137
    %v1142 = vtanh.pop %v1100
    %v1143 = vmul.f32 %v1142, 0.5
    %v1144 = vadd.f32 %v1143, 0.5
    %v1145 = vmul.f32 %v1144, %v1014
    %1147 = vrot.lane.b32.xlu0 %v1142, 96
    %v1148 = vpop.permute.xlu0 %1147
    %v1150 = vmul.f32 %v1144, %v1148
    %1152 = vrot.lane.b32.xlu0 %v1150, 16
    %v1153 = vpop.permute.xlu0 %1152
    %v1155 = vadd.f32 %v1145, %v1153
    %v1156 = vtanh.pop %v1155
    %1158 = vrot.lane.b32.xlu0 %v1156, 32
    %v1159 = vpop.permute.xlu0 %1158
    %v1161 = vmul.f32 %v1144, %v1159
    %1163 = vrot.lane.b32.xlu0 %v1161, 80
    %v1164 = vpop.permute.xlu0 %1163
    %v1165 = vsel %vm76, %v1164, 0
    %1167 = vmatprep.subr.mxu0 0.0
    %1168 = vmatpush1.msra.mxu0 0.0
    %1169 = vmatprep.subr.mxu0 0.0
    %1170 = vmatpush1.msra.mxu0 0.0
    %1171 = vmatprep.subr.mxu0 0.0
    %1172 = vmatpush1.msra.mxu0 0.0
    %1173 = vmatprep.subr.mxu0 0.0
    %1174 = vmatpush1.msra.mxu0 0.0
    %1175 = vmatprep.subr.mxu0 0.0
    %1176 = vmatpush1.msra.mxu0 0.0
    %1177 = vmatprep.subr.mxu0 0.0
    %1178 = vmatpush1.msra.mxu0 0.0
    %1179 = vmatprep.subr.mxu0 0.0
    %1180 = vmatpush1.msra.mxu0 0.0
    %1181 = vmatprep.subr.mxu0 0.0
    %1182 = vmatpush1.msra.mxu0 0.0
    %1183 = vmatprep.subr.mxu0 0.0
    %1184 = vmatpush1.msra.mxu0 0.0
    %1185 = vmatprep.subr.mxu0 0.0
    %1186 = vmatpush1.msra.mxu0 0.0
    %1187 = vmatprep.subr.mxu0 0.0
    %1188 = vmatpush1.msra.mxu0 0.0
    %1189 = vmatprep.subr.mxu0 0.0
    %1190 = vmatpush1.msra.mxu0 0.0
    %1191 = vmatprep.subr.mxu0 0.0
    %1192 = vmatpush1.msra.mxu0 0.0
    %1193 = vmatprep.subr.mxu0 0.0
    %1194 = vmatpush1.msra.mxu0 0.0
    %1195 = vmatprep.subr.mxu0 0.0
    %1196 = vmatpush1.msra.mxu0 %v37
    %1197 = vmatprep.subr.mxu0 0.0
    %1198 = vmatpush1.msra.mxu0 %v36
    %1199 = vmatprep.subr.mxu0 0.0
    %1200 = vmatpush2.msra.mxu0 0.0
    %1201 = vmatprep.subr.mxu0 0.0
    %1202 = vmatpush2.msra.mxu0 0.0
    %1203 = vmatprep.subr.mxu0 0.0
    %1204 = vmatpush2.msra.mxu0 0.0
    %1205 = vmatprep.subr.mxu0 0.0
    %1206 = vmatpush2.msra.mxu0 0.0
    %1207 = vmatprep.subr.mxu0 0.0
    %1208 = vmatpush2.msra.mxu0 0.0
    %1209 = vmatprep.subr.mxu0 0.0
    %1210 = vmatpush2.msra.mxu0 0.0
    %1211 = vmatprep.subr.mxu0 0.0
    %1212 = vmatpush2.msra.mxu0 0.0
    %1213 = vmatprep.subr.mxu0 0.0
    %1214 = vmatpush2.msra.mxu0 0.0
    %1215 = vmatprep.subr.mxu0 0.0
    %1216 = vmatpush2.msra.mxu0 0.0
    %1217 = vmatprep.subr.mxu0 0.0
    %1218 = vmatpush2.msra.mxu0 0.0
    %1219 = vmatprep.subr.mxu0 0.0
    %1220 = vmatpush2.msra.mxu0 0.0
    %1221 = vmatprep.subr.mxu0 0.0
    %1222 = vmatpush2.msra.mxu0 0.0
    %1223 = vmatprep.subr.mxu0 0.0
    %1224 = vmatpush2.msra.mxu0 0.0
    %1225 = vmatprep.subr.mxu0 0.0
    %1226 = vmatpush2.msra.mxu0 0.0
    %1227 = vmatprep.subr.mxu0 0.0
    %1228 = vmatpush2.msra.mxu0 0.0
    %1229 = vmatprep.subr.mxu0 0.0
    %1230 = vmatpush2.msra.mxu0 0.0
    %1231 = vmatprep.mubr.f32.mxu0 0.0
    %1232 = vmatmul.mubr.f32.gmra.mxu0 %v1165
    %v1233 = vpop.f32.mrf.mxu0
    %v1234 = vadd.f32 0.0, %v1233
    %v1235 = vpop.f32.mrf.mxu0
    %1236 = vdwg.mxu0
    %v1237 = vadd.f32 %v1234, %v61
    %v1240 = vunpack.c.l.s4 1966171168
    %v1241 = vunpack.c.0.s8 %v1240
    %v1242 = vlaneseq
    %v1243 = vshrl.u32 %v1242, 7
    %v1244 = vsub.s32 %v1241, %v1243
    %v1245 = vrot.slane %v1237, %v1244
    %v1246 = vcombine.high %v1245, %v1245
    %v1248 = vunpack.c.l.s4 1966171168
    %v1249 = vunpack.c.0.s8 %v1248
    %v1250 = vlaneseq
    %v1251 = vshrl.u32 %v1250, 7
    %v1252 = vsub.s32 %v1249, %v1251
    %v1253 = vrot.slane %v1245, %v1252
    %v1255 = vunpack.c.l.s4 1966171168
    %v1256 = vunpack.c.0.s8 %v1255
    %v1257 = vlaneseq
    %v1258 = vshrl.u32 %v1257, 7
    %v1259 = vsub.s32 %v1256, %v1258
    %v1260 = vrot.slane %v1246, %v1259
    %v1261 = vlaneseq
    %v1262 = vshrl.u32 %v1261, 7
    %v1263 = vsub.s32 0, %v1262
    %v1264 = vrot.slane %v1253, %v1263
    %v1265 = vlaneseq
    %v1266 = vshrl.u32 %v1265, 7
    %v1267 = vsub.s32 0, %v1266
    %v1268 = vrot.slane %v1260, %v1267
    %1269 = vrot.lane.b32.xlu0 %v1264, 64
    %v1270 = vpop.permute.xlu0 %1269
    %1271 = vrot.lane.b32.xlu0 %v1268, 64
    %v1272 = vpop.permute.xlu0 %1271
    %1275 = vst.msk [vmem:[%s4 + $0x7] sm:$0x1] %vm293, %v1270
    %1276 = vst.msk [vmem:[%s4 + $0xf] sm:$0x1] %vm293, %v1272
    %vm1278 = vcmask 123904
    %1279 = vst.msk [vmem:[#allocation6] sm:$0x3] %vm1278, %v1164
    %1281 = vrot.lane.b32.xlu0 %v1155, 112
    %v1282 = vpop.permute.xlu0 %1281
    %1284 = vst.msk [vmem:[#allocation7] sm:$0x3] %vm1278, %v1282
    // Predicated region
    $region22: #{skewed_gaussian_rnn_forward.1} parent=1 // pred_check
      _
    $region23: #{skewed_gaussian_rnn_forward.1} parent=1 // pred_check_branch
      %1286 = sbr.rel (0) target = $region25
    $region24: #{skewed_gaussian_rnn_forward.1} parent=1 // pred_region
      _
    $region25: #{skewed_gaussian_rnn_forward.1} parent=1 // pred_fallthru
      _
    // Predicated region
    $region26: #{skewed_gaussian_rnn_forward.1} parent=1 // pred_check
      _
    $region27: #{skewed_gaussian_rnn_forward.1} parent=1 // pred_check_branch
      %1288 = sbr.rel (0) target = $region29
    $region28: #{skewed_gaussian_rnn_forward.1} parent=1 // pred_region
      %s1290 = ssub.s32 32, 32
      %1291 = vsyncadd [#allocation5], %s1290
      %s1293 = sshll.u32 [#allocation6], 4
      %s1294 = int_to_ptr.vmem [resolvable:$true] %s1293
      %1296 = dma.vmem_to_hbm [thread:$0]  %s1294, 32, %s5, [#allocation5]
    $region29: #{skewed_gaussian_rnn_forward.1} parent=1 // pred_fallthru
      _
    // Predicated region
    $region30: #{skewed_gaussian_rnn_forward.1} parent=1 // pred_check
      _
    $region31: #{skewed_gaussian_rnn_forward.1} parent=1 // pred_check_branch
      %1298 = sbr.rel (0) target = $region33
    $region32: #{skewed_gaussian_rnn_forward.1} parent=1 // pred_region
      %s1300 = ssub.s32 32, 32
      %1301 = vsyncadd [#allocation8], %s1300
      %s1303 = sshll.u32 [#allocation7], 4
      %s1304 = int_to_ptr.vmem [resolvable:$true] %s1303
      %1306 = dma.vmem_to_hbm [thread:$0]  %s1304, 32, %s6, [#allocation8]
    $region33: #{skewed_gaussian_rnn_forward.1} parent=1 // pred_fallthru
      _
    // Predicated region
    $region34: #{skewed_gaussian_rnn_forward.1} parent=1 // pred_check
      _
    $region35: #{skewed_gaussian_rnn_forward.1} parent=1 // pred_check_branch
      %1308 = sbr.rel (0) target = $region37
    $region36: #{skewed_gaussian_rnn_forward.1} parent=1 // pred_region
      _
    $region37: #{skewed_gaussian_rnn_forward.1} parent=1 // pred_fallthru
      _
    // Predicated region
    $region38: #{skewed_gaussian_rnn_forward.1} parent=1 // pred_check
      _
    $region39: #{skewed_gaussian_rnn_forward.1} parent=1 // pred_check_branch
      %1310 = sbr.rel (0) target = $region41
    $region40: #{skewed_gaussian_rnn_forward.1} parent=1 // pred_region
      %1311 = dma.done [#allocation5], 32
    $region41: #{skewed_gaussian_rnn_forward.1} parent=1 // pred_fallthru
      _
    // Predicated region
    $region42: #{skewed_gaussian_rnn_forward.1} parent=1 // pred_check
      _
    $region43: #{skewed_gaussian_rnn_forward.1} parent=1 // pred_check_branch
      %1313 = sbr.rel (0) target = $region45
    $region44: #{skewed_gaussian_rnn_forward.1} parent=1 // pred_region
      %1314 = dma.done [#allocation8], 32
    $region45: #{skewed_gaussian_rnn_forward.1} parent=1 // pred_fallthru
      _
    %1315 = vsyncpa [#allocation4], 1
    %1316 = vsyncpa [#allocation5], 1
    %1317 = vsyncpa [#allocation8], 1

</llo_original>
